<compile_context>
chip_gen: v7x
topology: tpu7x:2x2x1
jax: 0.10.0
libtpu: 0.0.40
codegen_flags: <defaults>
</compile_context>

<pallas_src>
import functools

import jax
import jax.numpy as jnp
from jax import lax
from jax.experimental import pallas as pl
from jax.experimental.pallas import tpu as pltpu

HIDDEN = 20                      # hidden_dim of the module
H_PAD = 128                      # lane-dense padding of the hidden dim
TM_MAX = 512                     # row tile of the aggregation matmul
TK_MAX = 4096                    # reduction tile of the aggregation matmul
VMEM_LIMIT = 32 * 1024 * 1024    # explicit scoped-VMEM budget (safe on v5e/v6e/v7x)


def _round_up(v, m):
    return ((v + m - 1) // m) * m


def _pick_tiles(n):
    """N padding + (TM, TK) tiles; TM | N_pad and TK | N_pad always hold."""
    if n <= TM_MAX:
        n_pad = _round_up(n, 128)
        tm = n_pad
    else:
        n_pad = _round_up(n, TM_MAX)
        tm = TM_MAX
    tk = tm
    while tk * 2 <= TK_MAX and n_pad % (tk * 2) == 0:
        tk *= 2
    return n_pad, tm, tk


# --------------------------------------------------------------------------- kernels

def transform_kernel(h_ref, dis_ref, w_ref, hw_ref):
    """HW = dis * (H @ W)  (source-side normalization folded into the message)."""
    hw = jnp.dot(h_ref[...], w_ref[...], preferred_element_type=jnp.float32)
    hw_ref[...] = (hw * dis_ref[...]).astype(hw_ref.dtype)


def aggregate_transform_kernel(a_ref, hw_ref, dis_ref, b_ref, w_next_ref,
                               h_ref, hw_next_ref, acc_ref):
    """Layer l aggregate fused with layer l+1 transform:
         H_l      = relu(dis * (A @ HW_l) + b_l)
         HW_{l+1} = dis * (H_l @ W_{l+1})
    """
    k = pl.program_id(1)

    @pl.when(k == 0)
    def _():
        acc_ref[...] = jnp.zeros_like(acc_ref)

    acc_ref[...] += jnp.dot(a_ref[...], hw_ref[...],
                            preferred_element_type=jnp.float32)

    @pl.when(k == pl.num_programs(1) - 1)
    def _():
        h = jnp.maximum(acc_ref[...] * dis_ref[...] + b_ref[...], 0.0)  # f32 epilogue
        h_bf = h.astype(h_ref.dtype)
        h_ref[...] = h_bf
        hw_next = jnp.dot(h_bf, w_next_ref[...],
                          preferred_element_type=jnp.float32)
        hw_next_ref[...] = (hw_next * dis_ref[...]).astype(hw_next_ref.dtype)


def aggregate_head_kernel(a_ref, hw_ref, dis_ref, b_ref, h1_ref, h2_ref,
                          wl_ref, bl_ref, out_ref, acc_ref, *, num_classes):
    """Layer 3 aggregate fused with the prediction head:
         H_3 = relu(dis * (A @ HW_3) + b_3)
         out = log_softmax([H_1 | H_2 | H_3] @ Wl + bl)   (padded classes masked)
    """
    k = pl.program_id(1)

    @pl.when(k == 0)
    def _():
        acc_ref[...] = jnp.zeros_like(acc_ref)

    acc_ref[...] += jnp.dot(a_ref[...], hw_ref[...],
                            preferred_element_type=jnp.float32)

    @pl.when(k == pl.num_programs(1) - 1)
    def _():
        h3 = jnp.maximum(acc_ref[...] * dis_ref[...] + b_ref[...], 0.0)
        h3 = h3.astype(h1_ref.dtype)
        # three (tm,128)@(128,C) dots instead of one concat matmul -> no VMEM copy
        logits = (
            jnp.dot(h1_ref[...], wl_ref[0:H_PAD, :],
                    preferred_element_type=jnp.float32)
            + jnp.dot(h2_ref[...], wl_ref[H_PAD:2 * H_PAD, :],
                      preferred_element_type=jnp.float32)
            + jnp.dot(h3, wl_ref[2 * H_PAD:3 * H_PAD, :],
                      preferred_element_type=jnp.float32)
            + bl_ref[...])
        col = lax.broadcasted_iota(jnp.int32, logits.shape, 1)
        logits = jnp.where(col < num_classes, logits, -1e30)   # mask padded classes
        m = jnp.max(logits, axis=1, keepdims=True)
        z = logits - m
        lse = jnp.log(jnp.sum(jnp.exp(z), axis=1, keepdims=True))
        out_ref[...] = z - lse


# --------------------------------------------------------------------------- wrappers

def _transform(h, dis, w, n_pad, tm):
    f_in = h.shape[1]
    grid_m = n_pad // tm
    return pl.pallas_call(
        transform_kernel,
        out_shape=jax.ShapeDtypeStruct((n_pad, H_PAD), jnp.bfloat16),
        grid=(grid_m,),
        in_specs=[
            pl.BlockSpec((tm, f_in), lambda i: (i, 0)),
            pl.BlockSpec((tm, 1), lambda i: (i, 0)),
            pl.BlockSpec((f_in, H_PAD), lambda i: (0, 0)),
        ],
        out_specs=pl.BlockSpec((tm, H_PAD), lambda i: (i, 0)),
        compiler_params=pltpu.CompilerParams(
            dimension_semantics=("parallel",),
            vmem_limit_bytes=VMEM_LIMIT),
        cost_estimate=pl.CostEstimate(
            flops=2 * n_pad * f_in * H_PAD, transcendentals=0,
            bytes_accessed=2 * n_pad * (f_in + H_PAD) + 2 * f_in * H_PAD),
    )(h, dis, w)


def _aggregate_transform(a, hw, dis, b, w_next, n_pad, tm, tk):
    grid_m = n_pad // tm
    grid_k = n_pad // tk
    return pl.pallas_call(
        aggregate_transform_kernel,
        out_shape=(jax.ShapeDtypeStruct((n_pad, H_PAD), jnp.bfloat16),   # H_l
                   jax.ShapeDtypeStruct((n_pad, H_PAD), jnp.bfloat16)),  # HW_{l+1}
        grid=(grid_m, grid_k),
        in_specs=[
            pl.BlockSpec((tm, tk), lambda i, k: (i, k)),        # A tile
            pl.BlockSpec((tk, H_PAD), lambda i, k: (k, 0)),     # HW_l (reduction)
            pl.BlockSpec((tm, 1), lambda i, k: (i, 0)),         # dis rows (target side)
            pl.BlockSpec((1, H_PAD), lambda i, k: (0, 0)),      # bias_l
            pl.BlockSpec((H_PAD, H_PAD), lambda i, k: (0, 0)),  # W_{l+1}
        ],
        out_specs=[
            pl.BlockSpec((tm, H_PAD), lambda i, k: (i, 0)),
            pl.BlockSpec((tm, H_PAD), lambda i, k: (i, 0)),
        ],
        scratch_shapes=[pltpu.VMEM((tm, H_PAD), jnp.float32)],
        compiler_params=pltpu.CompilerParams(
            dimension_semantics=("parallel", "arbitrary"),
            vmem_limit_bytes=VMEM_LIMIT),
        cost_estimate=pl.CostEstimate(
            flops=2 * n_pad * n_pad * H_PAD + 2 * n_pad * H_PAD * H_PAD,
            transcendentals=0,
            bytes_accessed=2 * n_pad * n_pad
            + 2 * grid_m * n_pad * H_PAD + 4 * n_pad * H_PAD),
    )(a, hw, dis, b, w_next)


def _aggregate_head(a, hw, dis, b, h1, h2, wl, bl, num_classes, n_pad, tm, tk):
    grid_m = n_pad // tm
    grid_k = n_pad // tk
    c_pad = wl.shape[1]
    kernel = functools.partial(aggregate_head_kernel, num_classes=num_classes)
    return pl.pallas_call(
        kernel,
        out_shape=jax.ShapeDtypeStruct((n_pad, c_pad), jnp.float32),
        grid=(grid_m, grid_k),
        in_specs=[
            pl.BlockSpec((tm, tk), lambda i, k: (i, k)),            # A tile
            pl.BlockSpec((tk, H_PAD), lambda i, k: (k, 0)),         # HW_3 (reduction)
            pl.BlockSpec((tm, 1), lambda i, k: (i, 0)),             # dis rows
            pl.BlockSpec((1, H_PAD), lambda i, k: (0, 0)),          # bias_3
            pl.BlockSpec((tm, H_PAD), lambda i, k: (i, 0)),         # H_1 rows
            pl.BlockSpec((tm, H_PAD), lambda i, k: (i, 0)),         # H_2 rows
            pl.BlockSpec((3 * H_PAD, c_pad), lambda i, k: (0, 0)),  # Wl
            pl.BlockSpec((1, c_pad), lambda i, k: (0, 0)),          # bl
        ],
        out_specs=pl.BlockSpec((tm, c_pad), lambda i, k: (i, 0)),
        scratch_shapes=[pltpu.VMEM((tm, H_PAD), jnp.float32)],
        compiler_params=pltpu.CompilerParams(
            dimension_semantics=("parallel", "arbitrary"),
            vmem_limit_bytes=VMEM_LIMIT),
        cost_estimate=pl.CostEstimate(
            flops=2 * n_pad * n_pad * H_PAD + 2 * n_pad * 3 * H_PAD * c_pad,
            transcendentals=n_pad * c_pad,
            bytes_accessed=2 * n_pad * n_pad + 2 * grid_m * n_pad * H_PAD
            + 4 * n_pad * H_PAD + 4 * n_pad * c_pad),
    )(a, hw, dis, b, h1, h2, wl, bl)


def gcn3_forward(x, edge_index, params):
    """x: (N, F) float; edge_index: (2, E) int32 with row0=source, row1=target."""
    N, F_in = x.shape
    hidden = params["w1"].shape[1]
    C = params["wl"].shape[1]
    n_pad, tm, tk = _pick_tiles(N)
    f_pad = _round_up(F_in, 128)
    c_pad = _round_up(C, 128)

    # --- glue: raw dense adjacency (bf16) + D^{-1/2} vector (f32).
    #     A[t, s] = #edges s->t; deg = in-degree (PyG gcn_norm, add_self_loops=False).
    src = edge_index[0]
    tgt = edge_index[1]
    e_ones = jnp.ones(src.shape[0], jnp.float32)
    a = (jnp.zeros((n_pad, n_pad), jnp.bfloat16)
         .at[tgt, src].add(e_ones.astype(jnp.bfloat16)))
    deg = jnp.zeros((n_pad,), jnp.float32).at[tgt].add(e_ones)
    dis = jnp.where(deg > 0, lax.rsqrt(jnp.maximum(deg, 1e-12)), 0.0)
    dis = dis.reshape(n_pad, 1)

    # --- pad inputs / parameters to lane-dense shapes; bf16 matmul operands.
    x_pad = (jnp.zeros((n_pad, f_pad), jnp.bfloat16)
             .at[:N, :F_in].set(x.astype(jnp.bfloat16)))

    def pad_w(w, rows, cols):
        return (jnp.zeros((rows, cols), jnp.bfloat16)
                .at[:w.shape[0], :w.shape[1]].set(w.astype(jnp.bfloat16)))

    def pad_b(b, cols):
        b2 = b.reshape(1, -1).astype(jnp.float32)
        return jnp.zeros((1, cols), jnp.float32).at[:, :b2.shape[1]].set(b2)

    w1 = pad_w(params["w1"], f_pad, H_PAD)
    w2 = pad_w(params["w2"], H_PAD, H_PAD)
    w3 = pad_w(params["w3"], H_PAD, H_PAD)
    b1 = pad_b(params["b1"], H_PAD)
    b2 = pad_b(params["b2"], H_PAD)
    b3 = pad_b(params["b3"], H_PAD)

    # final linear: rows of wl placed at 128-aligned offsets so the in-kernel
    # per-slab dots over [h1|h2|h3] (128-lane aligned slabs) match exactly.
    wl = params["wl"].astype(jnp.bfloat16)
    wl_pad = jnp.zeros((3 * H_PAD, c_pad), jnp.bfloat16)
    for blk in range(3):
        wl_pad = wl_pad.at[blk * H_PAD: blk * H_PAD + hidden, :C].set(
            wl[blk * hidden:(blk + 1) * hidden, :])
    bl_pad = pad_b(params["bl"], c_pad)

    hw1 = _transform(x_pad, dis, w1, n_pad, tm)
    h1, hw2 = _aggregate_transform(a, hw1, dis, b1, w2, n_pad, tm, tk)
    h2, hw3 = _aggregate_transform(a, hw2, dis, b2, w3, n_pad, tm, tk)
    out = _aggregate_head(a, hw3, dis, b3, h1, h2, wl_pad, bl_pad, C, n_pad, tm, tk)
    return out[:N, :C]


# --------------------------------------------------------------------------- reference / init

def reference_forward(x, edge_index, params):
    """Pure-JAX f32 reference (dense A_hat) for a sanity check."""
    N = x.shape[0]
    src, tgt = edge_index[0], edge_index[1]
    ones = jnp.ones(src.shape[0], jnp.float32)
    A = jnp.zeros((N, N), jnp.float32).at[tgt, src].add(ones)
    deg = A.sum(axis=1)
    dis = jnp.where(deg > 0, lax.rsqrt(jnp.maximum(deg, 1e-12)), 0.0)
    a_hat = dis[:, None] * A * dis[None, :]

    def layer(h, w, b):
        return jnp.maximum(a_hat @ (h @ w) + b, 0.0)

    h1 = layer(x, params["w1"], params["b1"])
    h2 = layer(h1, params["w2"], params["b2"])
    h3 = layer(h2, params["w3"], params["b3"])
    logits = jnp.concatenate([h1, h2, h3], axis=1) @ params["wl"] + params["bl"]
    return jax.nn.log_softmax(logits, axis=1)


def init_params(key, num_node_features, num_classes, hidden=HIDDEN):
    ks = jax.random.split(key, 4)

    def glorot(k, fan_in, fan_out):
        scale = jnp.sqrt(6.0 / (fan_in + fan_out))
        return jax.random.uniform(k, (fan_in, fan_out), jnp.float32, -scale, scale)

    return {
        "w1": glorot(ks[0], num_node_features, hidden),
        "b1": jnp.zeros((1, hidden), jnp.float32),
        "w2": glorot(ks[1], hidden, hidden),
        "b2": jnp.zeros((1, hidden), jnp.float32),
        "w3": glorot(ks[2], hidden, hidden),
        "b3": jnp.zeros((1, hidden), jnp.float32),
        "wl": glorot(ks[3], 3 * hidden, num_classes),
        "bl": jnp.zeros((1, num_classes), jnp.float32),
    }


if __name__ == "__main__":
    key = jax.random.PRNGKey(0)
    k_x, k_e, k_p = jax.random.split(key, 3)

    N = 16                 # num nodes
    F_IN = 8               # dataset.num_node_features
    C = 4                  # dataset.num_classes
    E = 40                 # num edges

    x = jax.random.normal(k_x, (N, F_IN), jnp.float32)
    edge_index = jax.random.randint(k_e, (2, E), 0, N, dtype=jnp.int32)
    params = init_params(k_p, F_IN, C)

    fwd = jax.jit(gcn3_forward)
    out = jax.block_until_ready(fwd(x, edge_index, params))

    assert out.shape == (N, C)
    assert bool(jnp.all(jnp.isfinite(out)))
    # rows of log_softmax must exponentiate-sum to 1
    assert jnp.allclose(jnp.sum(jnp.exp(out), axis=1), 1.0, atol=1e-4)
    # agree with the pure-JAX f32 reference (bf16 matmul operands -> loose tol)
    ref = reference_forward(x, edge_index, params)
    assert jnp.allclose(out, ref, atol=0.2), float(jnp.max(jnp.abs(out - ref)))

    print("KERNEL_OK")
</pallas_src>

<mosaic_0001>
module attributes {stable_mosaic.version = 11 : i64} {
  func.func @transform_kernel(%arg0: i32, %arg1: memref<128x128xbf16, #tpu.memory_space<vmem>>, %arg2: memref<128x1xf32, #tpu.memory_space<vmem>>, %arg3: memref<128x128xbf16, #tpu.memory_space<vmem>>, %arg4: memref<128x128xbf16, #tpu.memory_space<vmem>>) attributes {dimension_semantics = [#tpu.dimension_semantics<parallel>], iteration_bounds = array<i64: 1>, scalar_prefetch = 0 : i64, scratch_operands = 0 : i64, tpu.core_type = #tpu.core_type<tc>, window_params = [{transform_indices = @transform_0, window_bounds = array<i64: 128, 128>}, {transform_indices = @transform_1, window_bounds = array<i64: 128, 1>}, {pipeline_mode = #tpu.pipeline_mode<synchronous>, transform_indices = @transform_2, window_bounds = array<i64: 128, 128>}, {transform_indices = @transform_3, window_bounds = array<i64: 128, 128>}]} {
    %c0 = arith.constant 0 : index
    %c0_0 = arith.constant 0 : index
    %0 = vector.load %arg1[%c0, %c0_0] : memref<128x128xbf16, #tpu.memory_space<vmem>>, vector<128x128xbf16>
    %c0_1 = arith.constant 0 : index
    %c0_2 = arith.constant 0 : index
    %1 = vector.load %arg3[%c0_1, %c0_2] : memref<128x128xbf16, #tpu.memory_space<vmem>>, vector<128x128xbf16>
    %cst = arith.constant dense<0.000000e+00> : vector<128x128xf32>
    %2 = tpu.matmul %0, %1, %cst {dimension_numbers = #tpu.dot_dimension_numbers<[1], [0], [0], [1], [0, 0, 1, 1], [], []>} : vector<128x128xbf16>, vector<128x128xbf16>, vector<128x128xf32> -> vector<128x128xf32>
    %c0_3 = arith.constant 0 : index
    %c0_4 = arith.constant 0 : index
    %3 = vector.load %arg2[%c0_3, %c0_4] : memref<128x1xf32, #tpu.memory_space<vmem>>, vector<128x1xf32>
    %4 = vector.broadcast %3 : vector<128x1xf32> to vector<128x128xf32>
    %5 = arith.mulf %2, %4 : vector<128x128xf32>
    %6 = arith.truncf %5 : vector<128x128xf32> to vector<128x128xbf16>
    %c0_5 = arith.constant 0 : index
    %c0_6 = arith.constant 0 : index
    %7 = vector.load %arg4[%c0_5, %c0_6] : memref<128x128xbf16, #tpu.memory_space<vmem>>, vector<128x128xbf16>
    tpu.vector_store %arg4[%c0_5, %c0_6], %6 {strides = array<i32>} : memref<128x128xbf16, #tpu.memory_space<vmem>>, vector<128x128xbf16>,
    return
  }
  func.func @transform_0(%arg0: i32) -> (i32, i32) {
    %c0_i32 = arith.constant 0 : i32
    %c0_i32_0 = arith.constant 0 : i32
    return %arg0, %c0_i32 : i32, i32
  }
  func.func @transform_1(%arg0: i32) -> (i32, i32) {
    %c0_i32 = arith.constant 0 : i32
    %c0_i32_0 = arith.constant 0 : i32
    return %arg0, %c0_i32 : i32, i32
  }
  func.func @transform_2(%arg0: i32) -> (i32, i32) {
    %c0_i32 = arith.constant 0 : i32
    %c0_i32_0 = arith.constant 0 : i32
    %c0_i32_1 = arith.constant 0 : i32
    return %c0_i32, %c0_i32_0 : i32, i32
  }
  func.func @transform_3(%arg0: i32) -> (i32, i32) {
    %c0_i32 = arith.constant 0 : i32
    %c0_i32_0 = arith.constant 0 : i32
    return %arg0, %c0_i32 : i32, i32
  }
}

module attributes {stable_mosaic.version = 11 : i64} {
  func.func @aggregate_transform_kernel(%arg0: i32, %arg1: i32, %arg2: memref<128x128xbf16, #tpu.memory_space<vmem>>, %arg3: memref<128x128xbf16, #tpu.memory_space<vmem>>, %arg4: memref<128x1xf32, #tpu.memory_space<vmem>>, %arg5: memref<1x128xf32, #tpu.memory_space<vmem>>, %arg6: memref<128x128xbf16, #tpu.memory_space<vmem>>, %arg7: memref<128x128xbf16, #tpu.memory_space<vmem>>, %arg8: memref<128x128xbf16, #tpu.memory_space<vmem>>, %arg9: memref<128x128xf32, #tpu.memory_space<vmem>>) attributes {dimension_semantics = [#tpu.dimension_semantics<parallel>, #tpu.dimension_semantics<arbitrary>], iteration_bounds = array<i64: 1, 1>, scalar_prefetch = 0 : i64, scratch_operands = 1 : i64, tpu.core_type = #tpu.core_type<tc>, window_params = [{transform_indices = @transform_0, window_bounds = array<i64: 128, 128>}, {transform_indices = @transform_1, window_bounds = array<i64: 128, 128>}, {transform_indices = @transform_2, window_bounds = array<i64: 128, 1>}, {pipeline_mode = #tpu.pipeline_mode<synchronous>, transform_indices = @transform_3, window_bounds = array<i64: 1, 128>}, {pipeline_mode = #tpu.pipeline_mode<synchronous>, transform_indices = @transform_4, window_bounds = array<i64: 128, 128>}, {transform_indices = @transform_5, window_bounds = array<i64: 128, 128>}, {transform_indices = @transform_6, window_bounds = array<i64: 128, 128>}]} {
    %c0_i32 = arith.constant 0 : i32
    %0 = arith.cmpi eq, %arg1, %c0_i32 : i32
    %1 = arith.extui %0 : i1 to i32
    %c0_i32_0 = arith.constant 0 : i32
    %2 = arith.cmpi ne, %1, %c0_i32_0 : i32
    scf.if %2 {
      %cst_10 = arith.constant 0.000000e+00 : f32
      %12 = vector.broadcast %cst_10 : f32 to vector<128x128xf32>
      %c0_11 = arith.constant 0 : index
      %c0_12 = arith.constant 0 : index
      %13 = vector.load %arg9[%c0_11, %c0_12] : memref<128x128xf32, #tpu.memory_space<vmem>>, vector<128x128xf32>
      tpu.vector_store %arg9[%c0_11, %c0_12], %12 {strides = array<i32>} : memref<128x128xf32, #tpu.memory_space<vmem>>, vector<128x128xf32>,
    } else {
    }
    %c0 = arith.constant 0 : index
    %c0_1 = arith.constant 0 : index
    %3 = vector.load %arg9[%c0, %c0_1] : memref<128x128xf32, #tpu.memory_space<vmem>>, vector<128x128xf32>
    %c0_2 = arith.constant 0 : index
    %c0_3 = arith.constant 0 : index
    %4 = vector.load %arg2[%c0_2, %c0_3] : memref<128x128xbf16, #tpu.memory_space<vmem>>, vector<128x128xbf16>
    %c0_4 = arith.constant 0 : index
    %c0_5 = arith.constant 0 : index
    %5 = vector.load %arg3[%c0_4, %c0_5] : memref<128x128xbf16, #tpu.memory_space<vmem>>, vector<128x128xbf16>
    %cst = arith.constant dense<0.000000e+00> : vector<128x128xf32>
    %6 = tpu.matmul %4, %5, %cst {dimension_numbers = #tpu.dot_dimension_numbers<[1], [0], [0], [1], [0, 0, 1, 1], [], []>} : vector<128x128xbf16>, vector<128x128xbf16>, vector<128x128xf32> -> vector<128x128xf32>
    %7 = arith.addf %3, %6 : vector<128x128xf32>
    %c0_6 = arith.constant 0 : index
    %c0_7 = arith.constant 0 : index
    %8 = vector.load %arg9[%c0_6, %c0_7] : memref<128x128xf32, #tpu.memory_space<vmem>>, vector<128x128xf32>
    tpu.vector_store %arg9[%c0_6, %c0_7], %7 {strides = array<i32>} : memref<128x128xf32, #tpu.memory_space<vmem>>, vector<128x128xf32>,
    %c0_i32_8 = arith.constant 0 : i32
    %9 = arith.cmpi eq, %arg1, %c0_i32_8 : i32
    %10 = arith.extui %9 : i1 to i32
    %c0_i32_9 = arith.constant 0 : i32
    %11 = arith.cmpi ne, %10, %c0_i32_9 : i32
    scf.if %11 {
      %c0_10 = arith.constant 0 : index
      %c0_11 = arith.constant 0 : index
      %12 = vector.load %arg9[%c0_10, %c0_11] : memref<128x128xf32, #tpu.memory_space<vmem>>, vector<128x128xf32>
      %c0_12 = arith.constant 0 : index
      %c0_13 = arith.constant 0 : index
      %13 = vector.load %arg4[%c0_12, %c0_13] : memref<128x1xf32, #tpu.memory_space<vmem>>, vector<128x1xf32>
      %14 = vector.broadcast %13 : vector<128x1xf32> to vector<128x128xf32>
      %15 = arith.mulf %12, %14 : vector<128x128xf32>
      %c0_14 = arith.constant 0 : index
      %c0_15 = arith.constant 0 : index
      %16 = vector.load %arg5[%c0_14, %c0_15] : memref<1x128xf32, #tpu.memory_space<vmem>>, vector<1x128xf32>
      %17 = vector.broadcast %16 : vector<1x128xf32> to vector<128x128xf32>
      %18 = arith.addf %15, %17 : vector<128x128xf32>
      %cst_16 = arith.constant 0.000000e+00 : f32
      %19 = vector.broadcast %cst_16 : f32 to vector<128x128xf32>
      %20 = arith.maximumf %18, %19 : vector<128x128xf32>
      %21 = arith.truncf %20 : vector<128x128xf32> to vector<128x128xbf16>
      %c0_17 = arith.constant 0 : index
      %c0_18 = arith.constant 0 : index
      %22 = vector.load %arg7[%c0_17, %c0_18] : memref<128x128xbf16, #tpu.memory_space<vmem>>, vector<128x128xbf16>
      tpu.vector_store %arg7[%c0_17, %c0_18], %21 {strides = array<i32>} : memref<128x128xbf16, #tpu.memory_space<vmem>>, vector<128x128xbf16>,
      %c0_19 = arith.constant 0 : index
      %c0_20 = arith.constant 0 : index
      %23 = vector.load %arg6[%c0_19, %c0_20] : memref<128x128xbf16, #tpu.memory_space<vmem>>, vector<128x128xbf16>
      %cst_21 = arith.constant dense<0.000000e+00> : vector<128x128xf32>
      %24 = tpu.matmul %21, %23, %cst_21 {dimension_numbers = #tpu.dot_dimension_numbers<[1], [0], [0], [1], [0, 0, 1, 1], [], []>} : vector<128x128xbf16>, vector<128x128xbf16>, vector<128x128xf32> -> vector<128x128xf32>
      %c0_22 = arith.constant 0 : index
      %c0_23 = arith.constant 0 : index
      %25 = vector.load %arg4[%c0_22, %c0_23] : memref<128x1xf32, #tpu.memory_space<vmem>>, vector<128x1xf32>
      %26 = vector.broadcast %25 : vector<128x1xf32> to vector<128x128xf32>
      %27 = arith.mulf %24, %26 : vector<128x128xf32>
      %28 = arith.truncf %27 : vector<128x128xf32> to vector<128x128xbf16>
      %c0_24 = arith.constant 0 : index
      %c0_25 = arith.constant 0 : index
      %29 = vector.load %arg8[%c0_24, %c0_25] : memref<128x128xbf16, #tpu.memory_space<vmem>>, vector<128x128xbf16>
      tpu.vector_store %arg8[%c0_24, %c0_25], %28 {strides = array<i32>} : memref<128x128xbf16, #tpu.memory_space<vmem>>, vector<128x128xbf16>,
    } else {
    }
    return
  }
  func.func @transform_0(%arg0: i32, %arg1: i32) -> (i32, i32) {
    %c0_i32 = arith.constant 0 : i32
    return %arg0, %arg1 : i32, i32
  }
  func.func @transform_1(%arg0: i32, %arg1: i32) -> (i32, i32) {
    %c0_i32 = arith.constant 0 : i32
    %c0_i32_0 = arith.constant 0 : i32
    return %arg1, %c0_i32 : i32, i32
  }
  func.func @transform_2(%arg0: i32, %arg1: i32) -> (i32, i32) {
    %c0_i32 = arith.constant 0 : i32
    %c0_i32_0 = arith.constant 0 : i32
    return %arg0, %c0_i32 : i32, i32
  }
  func.func @transform_3(%arg0: i32, %arg1: i32) -> (i32, i32) {
    %c0_i32 = arith.constant 0 : i32
    %c0_i32_0 = arith.constant 0 : i32
    %c0_i32_1 = arith.constant 0 : i32
    return %c0_i32, %c0_i32_0 : i32, i32
  }
  func.func @transform_4(%arg0: i32, %arg1: i32) -> (i32, i32) {
    %c0_i32 = arith.constant 0 : i32
    %c0_i32_0 = arith.constant 0 : i32
    %c0_i32_1 = arith.constant 0 : i32
    return %c0_i32, %c0_i32_0 : i32, i32
  }
  func.func @transform_5(%arg0: i32, %arg1: i32) -> (i32, i32) {
    %c0_i32 = arith.constant 0 : i32
    %c0_i32_0 = arith.constant 0 : i32
    return %arg0, %c0_i32 : i32, i32
  }
  func.func @transform_6(%arg0: i32, %arg1: i32) -> (i32, i32) {
    %c0_i32 = arith.constant 0 : i32
    %c0_i32_0 = arith.constant 0 : i32
    return %arg0, %c0_i32 : i32, i32
  }
}

module attributes {stable_mosaic.version = 11 : i64} {
  func.func @aggregate_head_kernel(%arg0: i32, %arg1: i32, %arg2: memref<128x128xbf16, #tpu.memory_space<vmem>>, %arg3: memref<128x128xbf16, #tpu.memory_space<vmem>>, %arg4: memref<128x1xf32, #tpu.memory_space<vmem>>, %arg5: memref<1x128xf32, #tpu.memory_space<vmem>>, %arg6: memref<128x128xbf16, #tpu.memory_space<vmem>>, %arg7: memref<128x128xbf16, #tpu.memory_space<vmem>>, %arg8: memref<384x128xbf16, #tpu.memory_space<vmem>>, %arg9: memref<1x128xf32, #tpu.memory_space<vmem>>, %arg10: memref<128x128xf32, #tpu.memory_space<vmem>>, %arg11: memref<128x128xf32, #tpu.memory_space<vmem>>) attributes {dimension_semantics = [#tpu.dimension_semantics<parallel>, #tpu.dimension_semantics<arbitrary>], iteration_bounds = array<i64: 1, 1>, scalar_prefetch = 0 : i64, scratch_operands = 1 : i64, tpu.core_type = #tpu.core_type<tc>, window_params = [{transform_indices = @transform_0, window_bounds = array<i64: 128, 128>}, {transform_indices = @transform_1, window_bounds = array<i64: 128, 128>}, {transform_indices = @transform_2, window_bounds = array<i64: 128, 1>}, {pipeline_mode = #tpu.pipeline_mode<synchronous>, transform_indices = @transform_3, window_bounds = array<i64: 1, 128>}, {transform_indices = @transform_4, window_bounds = array<i64: 128, 128>}, {transform_indices = @transform_5, window_bounds = array<i64: 128, 128>}, {pipeline_mode = #tpu.pipeline_mode<synchronous>, transform_indices = @transform_6, window_bounds = array<i64: 384, 128>}, {pipeline_mode = #tpu.pipeline_mode<synchronous>, transform_indices = @transform_7, window_bounds = array<i64: 1, 128>}, {transform_indices = @transform_8, window_bounds = array<i64: 128, 128>}]} {
    %c0_i32 = arith.constant 0 : i32
    %0 = arith.cmpi eq, %arg1, %c0_i32 : i32
    %1 = arith.extui %0 : i1 to i32
    %c0_i32_0 = arith.constant 0 : i32
    %2 = arith.cmpi ne, %1, %c0_i32_0 : i32
    scf.if %2 {
      %cst_10 = arith.constant 0.000000e+00 : f32
      %12 = vector.broadcast %cst_10 : f32 to vector<128x128xf32>
      %c0_11 = arith.constant 0 : index
      %c0_12 = arith.constant 0 : index
      %13 = vector.load %arg11[%c0_11, %c0_12] : memref<128x128xf32, #tpu.memory_space<vmem>>, vector<128x128xf32>
      tpu.vector_store %arg11[%c0_11, %c0_12], %12 {strides = array<i32>} : memref<128x128xf32, #tpu.memory_space<vmem>>, vector<128x128xf32>,
    } else {
    }
    %c0 = arith.constant 0 : index
    %c0_1 = arith.constant 0 : index
    %3 = vector.load %arg11[%c0, %c0_1] : memref<128x128xf32, #tpu.memory_space<vmem>>, vector<128x128xf32>
    %c0_2 = arith.constant 0 : index
    %c0_3 = arith.constant 0 : index
    %4 = vector.load %arg2[%c0_2, %c0_3] : memref<128x128xbf16, #tpu.memory_space<vmem>>, vector<128x128xbf16>
    %c0_4 = arith.constant 0 : index
    %c0_5 = arith.constant 0 : index
    %5 = vector.load %arg3[%c0_4, %c0_5] : memref<128x128xbf16, #tpu.memory_space<vmem>>, vector<128x128xbf16>
    %cst = arith.constant dense<0.000000e+00> : vector<128x128xf32>
    %6 = tpu.matmul %4, %5, %cst {dimension_numbers = #tpu.dot_dimension_numbers<[1], [0], [0], [1], [0, 0, 1, 1], [], []>} : vector<128x128xbf16>, vector<128x128xbf16>, vector<128x128xf32> -> vector<128x128xf32>
    %7 = arith.addf %3, %6 : vector<128x128xf32>
    %c0_6 = arith.constant 0 : index
    %c0_7 = arith.constant 0 : index
    %8 = vector.load %arg11[%c0_6, %c0_7] : memref<128x128xf32, #tpu.memory_space<vmem>>, vector<128x128xf32>
    tpu.vector_store %arg11[%c0_6, %c0_7], %7 {strides = array<i32>} : memref<128x128xf32, #tpu.memory_space<vmem>>, vector<128x128xf32>,
    %c0_i32_8 = arith.constant 0 : i32
    %9 = arith.cmpi eq, %arg1, %c0_i32_8 : i32
    %10 = arith.extui %9 : i1 to i32
    %c0_i32_9 = arith.constant 0 : i32
    %11 = arith.cmpi ne, %10, %c0_i32_9 : i32
    scf.if %11 {
      %c0_10 = arith.constant 0 : index
      %c0_11 = arith.constant 0 : index
      %12 = vector.load %arg11[%c0_10, %c0_11] : memref<128x128xf32, #tpu.memory_space<vmem>>, vector<128x128xf32>
      %c0_12 = arith.constant 0 : index
      %c0_13 = arith.constant 0 : index
      %13 = vector.load %arg4[%c0_12, %c0_13] : memref<128x1xf32, #tpu.memory_space<vmem>>, vector<128x1xf32>
      %14 = vector.broadcast %13 : vector<128x1xf32> to vector<128x128xf32>
      %15 = arith.mulf %12, %14 : vector<128x128xf32>
      %c0_14 = arith.constant 0 : index
      %c0_15 = arith.constant 0 : index
      %16 = vector.load %arg5[%c0_14, %c0_15] : memref<1x128xf32, #tpu.memory_space<vmem>>, vector<1x128xf32>
      %17 = vector.broadcast %16 : vector<1x128xf32> to vector<128x128xf32>
      %18 = arith.addf %15, %17 : vector<128x128xf32>
      %cst_16 = arith.constant 0.000000e+00 : f32
      %19 = vector.broadcast %cst_16 : f32 to vector<128x128xf32>
      %20 = arith.maximumf %18, %19 : vector<128x128xf32>
      %21 = arith.truncf %20 : vector<128x128xf32> to vector<128x128xbf16>
      %c0_17 = arith.constant 0 : index
      %c0_18 = arith.constant 0 : index
      %22 = vector.load %arg6[%c0_17, %c0_18] : memref<128x128xbf16, #tpu.memory_space<vmem>>, vector<128x128xbf16>
      %c0_19 = arith.constant 0 : index
      %c0_20 = arith.constant 0 : index
      %23 = vector.load %arg8[%c0_19, %c0_20] : memref<384x128xbf16, #tpu.memory_space<vmem>>, vector<128x128xbf16>
      %cst_21 = arith.constant dense<0.000000e+00> : vector<128x128xf32>
      %24 = tpu.matmul %22, %23, %cst_21 {dimension_numbers = #tpu.dot_dimension_numbers<[1], [0], [0], [1], [0, 0, 1, 1], [], []>} : vector<128x128xbf16>, vector<128x128xbf16>, vector<128x128xf32> -> vector<128x128xf32>
      %c0_22 = arith.constant 0 : index
      %c0_23 = arith.constant 0 : index
      %25 = vector.load %arg7[%c0_22, %c0_23] : memref<128x128xbf16, #tpu.memory_space<vmem>>, vector<128x128xbf16>
      %c128 = arith.constant 128 : index
      %c0_24 = arith.constant 0 : index
      %26 = vector.load %arg8[%c128, %c0_24] : memref<384x128xbf16, #tpu.memory_space<vmem>>, vector<128x128xbf16>
      %cst_25 = arith.constant dense<0.000000e+00> : vector<128x128xf32>
      %27 = tpu.matmul %25, %26, %cst_25 {dimension_numbers = #tpu.dot_dimension_numbers<[1], [0], [0], [1], [0, 0, 1, 1], [], []>} : vector<128x128xbf16>, vector<128x128xbf16>, vector<128x128xf32> -> vector<128x128xf32>
      %28 = arith.addf %24, %27 : vector<128x128xf32>
      %c256 = arith.constant 256 : index
      %c0_26 = arith.constant 0 : index
      %29 = vector.load %arg8[%c256, %c0_26] : memref<384x128xbf16, #tpu.memory_space<vmem>>, vector<128x128xbf16>
      %cst_27 = arith.constant dense<0.000000e+00> : vector<128x128xf32>
      %30 = tpu.matmul %21, %29, %cst_27 {dimension_numbers = #tpu.dot_dimension_numbers<[1], [0], [0], [1], [0, 0, 1, 1], [], []>} : vector<128x128xbf16>, vector<128x128xbf16>, vector<128x128xf32> -> vector<128x128xf32>
      %31 = arith.addf %28, %30 : vector<128x128xf32>
      %c0_28 = arith.constant 0 : index
      %c0_29 = arith.constant 0 : index
      %32 = vector.load %arg9[%c0_28, %c0_29] : memref<1x128xf32, #tpu.memory_space<vmem>>, vector<1x128xf32>
      %33 = vector.broadcast %32 : vector<1x128xf32> to vector<128x128xf32>
      %34 = arith.addf %31, %33 : vector<128x128xf32>
      %35 = tpu.iota {dimensions = array<i32: 1>} : vector<128x128xi32>
      %c4_i32 = arith.constant 4 : i32
      %36 = vector.broadcast %c4_i32 : i32 to vector<128x128xi32>
      %37 = arith.cmpi slt, %35, %36 : vector<128x128xi32>
      %cst_30 = arith.constant -1.000000e+30 : f32
      %38 = vector.broadcast %cst_30 : f32 to vector<128x128xf32>
      %39 = arith.select %37, %34, %38 : vector<128x128xi1>, vector<128x128xf32>
      %cst_31 = arith.constant dense<0xFF800000> : vector<128xf32>
      %40 = vector.multi_reduction <maximumf>, %39, %cst_31 [1] : vector<128x128xf32> to vector<128xf32>
      %41 = vector.shape_cast %40 : vector<128xf32> to vector<128x1xf32>
      %42 = vector.broadcast %41 : vector<128x1xf32> to vector<128x128xf32>
      %43 = arith.subf %39, %42 : vector<128x128xf32>
      %44 = math.exp %43 : vector<128x128xf32>
      %cst_32 = arith.constant dense<0.000000e+00> : vector<128xf32>
      %45 = vector.multi_reduction <add>, %44, %cst_32 [1] : vector<128x128xf32> to vector<128xf32>
      %46 = vector.shape_cast %45 : vector<128xf32> to vector<128x1xf32>
      %47 = math.log %46 : vector<128x1xf32>
      %48 = vector.broadcast %47 : vector<128x1xf32> to vector<128x128xf32>
      %49 = arith.subf %43, %48 : vector<128x128xf32>
      %c0_33 = arith.constant 0 : index
      %c0_34 = arith.constant 0 : index
      %50 = vector.load %arg10[%c0_33, %c0_34] : memref<128x128xf32, #tpu.memory_space<vmem>>, vector<128x128xf32>
      tpu.vector_store %arg10[%c0_33, %c0_34], %49 {strides = array<i32>} : memref<128x128xf32, #tpu.memory_space<vmem>>, vector<128x128xf32>,
    } else {
    }
    return
  }
  func.func @transform_0(%arg0: i32, %arg1: i32) -> (i32, i32) {
    %c0_i32 = arith.constant 0 : i32
    return %arg0, %arg1 : i32, i32
  }
  func.func @transform_1(%arg0: i32, %arg1: i32) -> (i32, i32) {
    %c0_i32 = arith.constant 0 : i32
    %c0_i32_0 = arith.constant 0 : i32
    return %arg1, %c0_i32 : i32, i32
  }
  func.func @transform_2(%arg0: i32, %arg1: i32) -> (i32, i32) {
    %c0_i32 = arith.constant 0 : i32
    %c0_i32_0 = arith.constant 0 : i32
    return %arg0, %c0_i32 : i32, i32
  }
  func.func @transform_3(%arg0: i32, %arg1: i32) -> (i32, i32) {
    %c0_i32 = arith.constant 0 : i32
    %c0_i32_0 = arith.constant 0 : i32
    %c0_i32_1 = arith.constant 0 : i32
    return %c0_i32, %c0_i32_0 : i32, i32
  }
  func.func @transform_4(%arg0: i32, %arg1: i32) -> (i32, i32) {
    %c0_i32 = arith.constant 0 : i32
    %c0_i32_0 = arith.constant 0 : i32
    return %arg0, %c0_i32 : i32, i32
  }
  func.func @transform_5(%arg0: i32, %arg1: i32) -> (i32, i32) {
    %c0_i32 = arith.constant 0 : i32
    %c0_i32_0 = arith.constant 0 : i32
    return %arg0, %c0_i32 : i32, i32
  }
  func.func @transform_6(%arg0: i32, %arg1: i32) -> (i32, i32) {
    %c0_i32 = arith.constant 0 : i32
    %c0_i32_0 = arith.constant 0 : i32
    %c0_i32_1 = arith.constant 0 : i32
    return %c0_i32, %c0_i32_0 : i32, i32
  }
  func.func @transform_7(%arg0: i32, %arg1: i32) -> (i32, i32) {
    %c0_i32 = arith.constant 0 : i32
    %c0_i32_0 = arith.constant 0 : i32
    %c0_i32_1 = arith.constant 0 : i32
    return %c0_i32, %c0_i32_0 : i32, i32
  }
  func.func @transform_8(%arg0: i32, %arg1: i32) -> (i32, i32) {
    %c0_i32 = arith.constant 0 : i32
    %c0_i32_0 = arith.constant 0 : i32
    return %arg0, %c0_i32 : i32, i32
  }
}

</mosaic_0001>

<llo_original>
// kernel: gcn3_forward.4
$region0: #{gcn3_forward.4}
  #allocation0 [shape = 'u32[]', space=smem, size = 0x4, offset = 0x4, fixed_abs, tag = 'smem constant byte address 0x4 - core index']
  #allocation1 [shape = 'u32[144,128]{1,0:T(1,128)}', space=vmem, size = 0x12000, scoped, tag = 'internal scratch']
  %s0 = inlined_call_operand.vmem [shape: bf16[128,128], index: 0, kind: input, shape index: {}]
  %s1 = inlined_call_operand.vmem [shape: f32[128,1], index: 1, kind: input, shape index: {}]
  %s2 = inlined_call_operand.vmem [shape: bf16[128,128], index: 2, kind: input, shape index: {}]
  %s3 = inlined_call_operand.vmem [shape: bf16[128,128], index: 3, kind: output, shape index: {}]
  %s4 = sld [smem:[#allocation0]]
  $region22: #{gcn3_forward.4} parent=0
    _
  %s6 = ssub.s32 1, %s4
  %s7 = scalar_select 0, %s6, %s4
  // Predicated region
  $region2: #{gcn3_forward.4} parent=0 // pred_check
    _
  $region3: #{gcn3_forward.4} parent=0 // pred_check_branch
    %9 = sbr.rel (0) target = $region5
  $region4: #{gcn3_forward.4} parent=0 // pred_region
    _
  $region5: #{gcn3_forward.4} parent=0 // pred_fallthru
    _
  // Predicated region
  $region6: #{gcn3_forward.4} parent=0 // pred_check
    _
  $region7: #{gcn3_forward.4} parent=0 // pred_check_branch
    %11 = sbr.rel (0) target = $region9
  $region8: #{gcn3_forward.4} parent=0 // pred_region
    _
  $region9: #{gcn3_forward.4} parent=0 // pred_fallthru
    _
  // Predicated region
  $region10: #{gcn3_forward.4} parent=0 // pred_check
    _
  $region11: #{gcn3_forward.4} parent=0 // pred_check_branch
    %13 = sbr.rel (0) target = $region13
  $region12: #{gcn3_forward.4} parent=0 // pred_region
    _
  $region13: #{gcn3_forward.4} parent=0 // pred_fallthru
    _
  %v15 = vld [vmem:[%s0] sm:$0xf]
  %v16 = vld [vmem:[%s0 + $0x4] sm:$0xf]
  %v17 = vld [vmem:[%s0 + $0x8] sm:$0xf]
  %v18 = vld [vmem:[%s0 + $0xc] sm:$0xf]
  %v19 = vld [vmem:[%s0 + $0x10] sm:$0xf]
  %v20 = vld [vmem:[%s0 + $0x14] sm:$0xf]
  %v21 = vld [vmem:[%s0 + $0x18] sm:$0xf]
  %v22 = vld [vmem:[%s0 + $0x1c] sm:$0xf]
  %v23 = vld [vmem:[%s0 + $0x20] sm:$0xf]
  %v24 = vld [vmem:[%s0 + $0x24] sm:$0xf]
  %v25 = vld [vmem:[%s0 + $0x28] sm:$0xf]
  %v26 = vld [vmem:[%s0 + $0x2c] sm:$0xf]
  %v27 = vld [vmem:[%s0 + $0x30] sm:$0xf]
  %v28 = vld [vmem:[%s0 + $0x34] sm:$0xf]
  %v29 = vld [vmem:[%s0 + $0x38] sm:$0xf]
  %v30 = vld [vmem:[%s0 + $0x3c] sm:$0xf]
  %v31 = vld [vmem:[%s2] sm:$0xf]
  %v32 = vld [vmem:[%s2 + $0x4] sm:$0xf]
  %v33 = vld [vmem:[%s2 + $0x8] sm:$0xf]
  %v34 = vld [vmem:[%s2 + $0xc] sm:$0xf]
  %v35 = vld [vmem:[%s2 + $0x10] sm:$0xf]
  %v36 = vld [vmem:[%s2 + $0x14] sm:$0xf]
  %v37 = vld [vmem:[%s2 + $0x18] sm:$0xf]
  %v38 = vld [vmem:[%s2 + $0x1c] sm:$0xf]
  %v39 = vld [vmem:[%s2 + $0x20] sm:$0xf]
  %v40 = vld [vmem:[%s2 + $0x24] sm:$0xf]
  %v41 = vld [vmem:[%s2 + $0x28] sm:$0xf]
  %v42 = vld [vmem:[%s2 + $0x2c] sm:$0xf]
  %v43 = vld [vmem:[%s2 + $0x30] sm:$0xf]
  %v44 = vld [vmem:[%s2 + $0x34] sm:$0xf]
  %v45 = vld [vmem:[%s2 + $0x38] sm:$0xf]
  %v46 = vld [vmem:[%s2 + $0x3c] sm:$0xf]
  %v63 = vunpack.c.l.b16 %v15
  %v64 = vunpack.c.l.b16 %v16
  %v65 = vunpack.c.l.b16 %v17
  %v66 = vunpack.c.l.b16 %v18
  %v67 = vunpack.c.l.b16 %v19
  %v68 = vunpack.c.l.b16 %v20
  %v69 = vunpack.c.l.b16 %v21
  %v70 = vunpack.c.l.b16 %v22
  %v71 = vunpack.c.l.b16 %v23
  %v72 = vunpack.c.l.b16 %v24
  %v73 = vunpack.c.l.b16 %v25
  %v74 = vunpack.c.l.b16 %v26
  %v75 = vunpack.c.l.b16 %v27
  %v76 = vunpack.c.l.b16 %v28
  %v77 = vunpack.c.l.b16 %v29
  %v78 = vunpack.c.l.b16 %v30
  %v79 = vpack.c.b16 %v64, %v63
  %v80 = vpack.c.b16 %v66, %v65
  %v81 = vpack.c.b16 %v68, %v67
  %v82 = vpack.c.b16 %v70, %v69
  %v83 = vpack.c.b16 %v72, %v71
  %v84 = vpack.c.b16 %v74, %v73
  %v85 = vpack.c.b16 %v76, %v75
  %v86 = vpack.c.b16 %v78, %v77
  %v111 = vunpack.c.l.b16 %v31
  %v112 = vunpack.c.l.b16 %v32
  %v113 = vunpack.c.l.b16 %v33
  %v114 = vunpack.c.l.b16 %v34
  %v115 = vunpack.c.l.b16 %v35
  %v116 = vunpack.c.l.b16 %v36
  %v117 = vunpack.c.l.b16 %v37
  %v118 = vunpack.c.l.b16 %v38
  %v119 = vunpack.c.l.b16 %v39
  %v120 = vunpack.c.l.b16 %v40
  %v121 = vunpack.c.l.b16 %v41
  %v122 = vunpack.c.l.b16 %v42
  %v123 = vunpack.c.l.b16 %v43
  %v124 = vunpack.c.l.b16 %v44
  %v125 = vunpack.c.l.b16 %v45
  %v126 = vunpack.c.l.b16 %v46
  %v127 = vpack.c.b16 %v112, %v111
  %v128 = vpack.c.b16 %v114, %v113
  %v129 = vpack.c.b16 %v116, %v115
  %v130 = vpack.c.b16 %v118, %v117
  %v131 = vpack.c.b16 %v120, %v119
  %v132 = vpack.c.b16 %v122, %v121
  %v133 = vpack.c.b16 %v124, %v123
  %v134 = vpack.c.b16 %v126, %v125
  %143 = vmatprep.subr.bf16.mxu0 0
  %144 = vmatpush1.bf16.msra.mxu0 %v127
  %145 = vmatprep.subr.bf16.mxu0 0
  %146 = vmatpush1.bf16.msra.mxu0 %v128
  %147 = vmatprep.subr.bf16.mxu0 0
  %148 = vmatpush1.bf16.msra.mxu0 %v129
  %149 = vmatprep.subr.bf16.mxu0 0
  %150 = vmatpush1.bf16.msra.mxu0 %v130
  %151 = vmatprep.subr.bf16.mxu0 0
  %152 = vmatpush1.bf16.msra.mxu0 %v131
  %153 = vmatprep.subr.bf16.mxu0 0
  %154 = vmatpush1.bf16.msra.mxu0 %v132
  %155 = vmatprep.subr.bf16.mxu0 0
  %156 = vmatpush1.bf16.msra.mxu0 %v133
  %157 = vmatprep.subr.bf16.mxu0 0
  %158 = vmatpush1.bf16.msra.mxu0 %v134
  %159 = vmatprep.subr.bf16.mxu0 0
  %160 = vmatpush1.bf16.msra.mxu0 0
  %161 = vmatprep.subr.bf16.mxu0 0
  %162 = vmatpush1.bf16.msra.mxu0 0
  %163 = vmatprep.subr.bf16.mxu0 0
  %164 = vmatpush1.bf16.msra.mxu0 0
  %165 = vmatprep.subr.bf16.mxu0 0
  %166 = vmatpush1.bf16.msra.mxu0 0
  %167 = vmatprep.subr.bf16.mxu0 0
  %168 = vmatpush1.bf16.msra.mxu0 0
  %169 = vmatprep.subr.bf16.mxu0 0
  %170 = vmatpush1.bf16.msra.mxu0 0
  %171 = vmatprep.subr.bf16.mxu0 0
  %172 = vmatpush1.bf16.msra.mxu0 0
  %173 = vmatprep.subr.bf16.mxu0 0
  %174 = vmatpush1.bf16.msra.mxu0 0
  %175 = vmatprep.mubr.bf16.mxu0 0
  %176 = vmatmul.mubr.bf16.gmra.mrb[0].mxu0 %v79
  %v177 = vpop.f32.mrb[0].mxu0
  %v178 = vadd.f32 0.0, %v177
  %v179 = vpop.f32.mrb[0].mxu0
  %v180 = vpop.f32.mrb[0].mxu0
  %v181 = vadd.f32 0.0, %v180
  %v182 = vpop.f32.mrb[0].mxu0
  %183 = vmatprep.mubr.bf16.mxu0 0
  %184 = vmatmul.mubr.bf16.gmra.mrb[0].mxu0 %v80
  %v185 = vpop.f32.mrb[0].mxu0
  %v186 = vadd.f32 0.0, %v185
  %v187 = vpop.f32.mrb[0].mxu0
  %v188 = vpop.f32.mrb[0].mxu0
  %v189 = vadd.f32 0.0, %v188
  %v190 = vpop.f32.mrb[0].mxu0
  %191 = vmatprep.mubr.bf16.mxu0 0
  %192 = vmatmul.mubr.bf16.gmra.mrb[0].mxu0 %v81
  %v193 = vpop.f32.mrb[0].mxu0
  %v194 = vadd.f32 0.0, %v193
  %v195 = vpop.f32.mrb[0].mxu0
  %v196 = vpop.f32.mrb[0].mxu0
  %v197 = vadd.f32 0.0, %v196
  %v198 = vpop.f32.mrb[0].mxu0
  %199 = vmatprep.mubr.bf16.mxu0 0
  %200 = vmatmul.mubr.bf16.gmra.mrb[0].mxu0 %v82
  %v201 = vpop.f32.mrb[0].mxu0
  %v202 = vadd.f32 0.0, %v201
  %v203 = vpop.f32.mrb[0].mxu0
  %v204 = vpop.f32.mrb[0].mxu0
  %v205 = vadd.f32 0.0, %v204
  %v206 = vpop.f32.mrb[0].mxu0
  %207 = vmatprep.mubr.bf16.mxu0 0
  %208 = vmatmul.mubr.bf16.gmra.mrb[0].mxu0 %v83
  %v209 = vpop.f32.mrb[0].mxu0
  %v210 = vadd.f32 0.0, %v209
  %v211 = vpop.f32.mrb[0].mxu0
  %v212 = vpop.f32.mrb[0].mxu0
  %v213 = vadd.f32 0.0, %v212
  %v214 = vpop.f32.mrb[0].mxu0
  %215 = vmatprep.mubr.bf16.mxu0 0
  %216 = vmatmul.mubr.bf16.gmra.mrb[0].mxu0 %v84
  %v217 = vpop.f32.mrb[0].mxu0
  %v218 = vadd.f32 0.0, %v217
  %v219 = vpop.f32.mrb[0].mxu0
  %v220 = vpop.f32.mrb[0].mxu0
  %v221 = vadd.f32 0.0, %v220
  %v222 = vpop.f32.mrb[0].mxu0
  %223 = vmatprep.mubr.bf16.mxu0 0
  %224 = vmatmul.mubr.bf16.gmra.mrb[0].mxu0 %v85
  %v225 = vpop.f32.mrb[0].mxu0
  %v226 = vadd.f32 0.0, %v225
  %v227 = vpop.f32.mrb[0].mxu0
  %v228 = vpop.f32.mrb[0].mxu0
  %v229 = vadd.f32 0.0, %v228
  %v230 = vpop.f32.mrb[0].mxu0
  %231 = vmatprep.mubr.bf16.mxu0 0
  %232 = vmatmul.mubr.bf16.gmra.mrb[0].mxu0 %v86
  %v233 = vpop.f32.mrb[0].mxu0
  %v234 = vadd.f32 0.0, %v233
  %v235 = vpop.f32.mrb[0].mxu0
  %v236 = vpop.f32.mrb[0].mxu0
  %v237 = vadd.f32 0.0, %v236
  %v238 = vpop.f32.mrb[0].mxu0
  %239 = vdwg.mxu0
  %v240 = vld [vmem:[%s1] sm:$0xff]
  %v241 = vld [vmem:[%s1 + $0x8] sm:$0xff]
  %v242 = vld [vmem:[%s1 + $0x10] sm:$0xff]
  %v243 = vld [vmem:[%s1 + $0x18] sm:$0xff]
  %v244 = vld [vmem:[%s1 + $0x20] sm:$0xff]
  %v245 = vld [vmem:[%s1 + $0x28] sm:$0xff]
  %v246 = vld [vmem:[%s1 + $0x30] sm:$0xff]
  %v247 = vld [vmem:[%s1 + $0x38] sm:$0xff]
  %v248 = vld [vmem:[%s1 + $0x40] sm:$0xff]
  %v249 = vld [vmem:[%s1 + $0x48] sm:$0xff]
  %v250 = vld [vmem:[%s1 + $0x50] sm:$0xff]
  %v251 = vld [vmem:[%s1 + $0x58] sm:$0xff]
  %v252 = vld [vmem:[%s1 + $0x60] sm:$0xff]
  %v253 = vld [vmem:[%s1 + $0x68] sm:$0xff]
  %v254 = vld [vmem:[%s1 + $0x70] sm:$0xff]
  %v255 = vld [vmem:[%s1 + $0x78] sm:$0xff]
  %257 = vset.pattern.permute.xlu0 0
  %258 = vperm.xlu0 %257, %v240
  %v259 = vpop.permute.xlu0 %258
  %262 = vset.pattern.permute.xlu0 0
  %263 = vperm.xlu0 %262, %v241
  %v264 = vpop.permute.xlu0 %263
  %267 = vset.pattern.permute.xlu0 0
  %268 = vperm.xlu0 %267, %v242
  %v269 = vpop.permute.xlu0 %268
  %272 = vset.pattern.permute.xlu0 0
  %273 = vperm.xlu0 %272, %v243
  %v274 = vpop.permute.xlu0 %273
  %277 = vset.pattern.permute.xlu0 0
  %278 = vperm.xlu0 %277, %v244
  %v279 = vpop.permute.xlu0 %278
  %282 = vset.pattern.permute.xlu0 0
  %283 = vperm.xlu0 %282, %v245
  %v284 = vpop.permute.xlu0 %283
  %287 = vset.pattern.permute.xlu0 0
  %288 = vperm.xlu0 %287, %v246
  %v289 = vpop.permute.xlu0 %288
  %292 = vset.pattern.permute.xlu0 0
  %293 = vperm.xlu0 %292, %v247
  %v294 = vpop.permute.xlu0 %293
  %297 = vset.pattern.permute.xlu0 0
  %298 = vperm.xlu0 %297, %v248
  %v299 = vpop.permute.xlu0 %298
  %302 = vset.pattern.permute.xlu0 0
  %303 = vperm.xlu0 %302, %v249
  %v304 = vpop.permute.xlu0 %303
  %307 = vset.pattern.permute.xlu0 0
  %308 = vperm.xlu0 %307, %v250
  %v309 = vpop.permute.xlu0 %308
  %312 = vset.pattern.permute.xlu0 0
  %313 = vperm.xlu0 %312, %v251
  %v314 = vpop.permute.xlu0 %313
  %317 = vset.pattern.permute.xlu0 0
  %318 = vperm.xlu0 %317, %v252
  %v319 = vpop.permute.xlu0 %318
  %322 = vset.pattern.permute.xlu0 0
  %323 = vperm.xlu0 %322, %v253
  %v324 = vpop.permute.xlu0 %323
  %327 = vset.pattern.permute.xlu0 0
  %328 = vperm.xlu0 %327, %v254
  %v329 = vpop.permute.xlu0 %328
  %332 = vset.pattern.permute.xlu0 0
  %333 = vperm.xlu0 %332, %v255
  %v334 = vpop.permute.xlu0 %333
  %v336 = vmul.f32 %v178, %v259
  %v337 = vmul.f32 %v181, %v264
  %v338 = vmul.f32 %v186, %v269
  %v339 = vmul.f32 %v189, %v274
  %v340 = vmul.f32 %v194, %v279
  %v341 = vmul.f32 %v197, %v284
  %v342 = vmul.f32 %v202, %v289
  %v343 = vmul.f32 %v205, %v294
  %v344 = vmul.f32 %v210, %v299
  %v345 = vmul.f32 %v213, %v304
  %v346 = vmul.f32 %v218, %v309
  %v347 = vmul.f32 %v221, %v314
  %v348 = vmul.f32 %v226, %v319
  %v349 = vmul.f32 %v229, %v324
  %v350 = vmul.f32 %v234, %v329
  %v351 = vmul.f32 %v237, %v334
  %v352 = vpack.c.bf16 %v337, %v336
  %v353 = vpack.c.bf16 %v339, %v338
  %v354 = vpack.c.bf16 %v341, %v340
  %v355 = vpack.c.bf16 %v343, %v342
  %v356 = vpack.c.bf16 %v345, %v344
  %v357 = vpack.c.bf16 %v347, %v346
  %v358 = vpack.c.bf16 %v349, %v348
  %v359 = vpack.c.bf16 %v351, %v350
  %v368 = vunpack.c.l.b16 %v352
  %v369 = vunpack.c.h.b16 %v352
  %v370 = vunpack.c.l.b16 %v353
  %v371 = vunpack.c.h.b16 %v353
  %v372 = vunpack.c.l.b16 %v354
  %v373 = vunpack.c.h.b16 %v354
  %v374 = vunpack.c.l.b16 %v355
  %v375 = vunpack.c.h.b16 %v355
  %v376 = vunpack.c.l.b16 %v356
  %v377 = vunpack.c.h.b16 %v356
  %v378 = vunpack.c.l.b16 %v357
  %v379 = vunpack.c.h.b16 %v357
  %v380 = vunpack.c.l.b16 %v358
  %v381 = vunpack.c.h.b16 %v358
  %v382 = vunpack.c.l.b16 %v359
  %v383 = vunpack.c.h.b16 %v359
  %v384 = vpack.c.b16 %v368, %v368
  %v385 = vpack.c.b16 %v369, %v369
  %v386 = vpack.c.b16 %v370, %v370
  %v387 = vpack.c.b16 %v371, %v371
  %v388 = vpack.c.b16 %v372, %v372
  %v389 = vpack.c.b16 %v373, %v373
  %v390 = vpack.c.b16 %v374, %v374
  %v391 = vpack.c.b16 %v375, %v375
  %v392 = vpack.c.b16 %v376, %v376
  %v393 = vpack.c.b16 %v377, %v377
  %v394 = vpack.c.b16 %v378, %v378
  %v395 = vpack.c.b16 %v379, %v379
  %v396 = vpack.c.b16 %v380, %v380
  %v397 = vpack.c.b16 %v381, %v381
  %v398 = vpack.c.b16 %v382, %v382
  %v399 = vpack.c.b16 %v383, %v383
  %416 = vst [vmem:[%s3] sm:$0xf] %v384
  %417 = vst [vmem:[%s3 + $0x4] sm:$0xf] %v385
  %418 = vst [vmem:[%s3 + $0x8] sm:$0xf] %v386
  %419 = vst [vmem:[%s3 + $0xc] sm:$0xf] %v387
  %420 = vst [vmem:[%s3 + $0x10] sm:$0xf] %v388
  %421 = vst [vmem:[%s3 + $0x14] sm:$0xf] %v389
  %422 = vst [vmem:[%s3 + $0x18] sm:$0xf] %v390
  %423 = vst [vmem:[%s3 + $0x1c] sm:$0xf] %v391
  %424 = vst [vmem:[%s3 + $0x20] sm:$0xf] %v392
  %425 = vst [vmem:[%s3 + $0x24] sm:$0xf] %v393
  %426 = vst [vmem:[%s3 + $0x28] sm:$0xf] %v394
  %427 = vst [vmem:[%s3 + $0x2c] sm:$0xf] %v395
  %428 = vst [vmem:[%s3 + $0x30] sm:$0xf] %v396
  %429 = vst [vmem:[%s3 + $0x34] sm:$0xf] %v397
  %430 = vst [vmem:[%s3 + $0x38] sm:$0xf] %v398
  %431 = vst [vmem:[%s3 + $0x3c] sm:$0xf] %v399
  // Predicated region
  $region14: #{gcn3_forward.4} parent=0 // pred_check
    _
  $region15: #{gcn3_forward.4} parent=0 // pred_check_branch
    %433 = sbr.rel (0) target = $region17
  $region16: #{gcn3_forward.4} parent=0 // pred_region
    _
  $region17: #{gcn3_forward.4} parent=0 // pred_fallthru
    _
  // Predicated region
  $region18: #{gcn3_forward.4} parent=0 // pred_check
    _
  $region19: #{gcn3_forward.4} parent=0 // pred_check_branch
    %435 = sbr.rel (0) target = $region21
  $region20: #{gcn3_forward.4} parent=0 // pred_region
    _
  $region21: #{gcn3_forward.4} parent=0 // pred_fallthru
    _

// kernel: gcn3_forward.5
$region0: #{gcn3_forward.5}
  #allocation0 [shape = 'u32[]', space=smem, size = 0x4, offset = 0x4, fixed_abs, tag = 'smem constant byte address 0x4 - core index']
  #allocation1 [shape = 'u32[144,128]{1,0:T(1,128)}', space=vmem, size = 0x12000, scoped, tag = 'internal scratch']
  #allocation2 [shape = 'f32[128,128]{1,0:T(8,128)}', space=vmem, size = 0x10000, scoped, tag = 'scratch operand']
  %s0 = inlined_call_operand.vmem [shape: bf16[128,128], index: 0, kind: input, shape index: {}]
  %s1 = inlined_call_operand.vmem [shape: bf16[128,128], index: 1, kind: input, shape index: {}]
  %s2 = inlined_call_operand.vmem [shape: f32[128,1], index: 2, kind: input, shape index: {}]
  %s3 = inlined_call_operand.vmem [shape: f32[1,128], index: 3, kind: input, shape index: {}]
  %s4 = inlined_call_operand.vmem [shape: bf16[128,128], index: 4, kind: input, shape index: {}]
  %s5 = inlined_call_operand.vmem [shape: bf16[128,128], index: 5, kind: output, shape index: {0}]
  %s6 = inlined_call_operand.vmem [shape: bf16[128,128], index: 6, kind: output, shape index: {1}]
  %7 = xla_tuple %s5, %s6
  %s8 = sld [smem:[#allocation0]]
  $region46: #{gcn3_forward.5} parent=0
    _
  %s10 = ssub.s32 1, %s8
  %s11 = scalar_select 0, %s10, %s8
  // Predicated region
  $region2: #{gcn3_forward.5} parent=0 // pred_check
    _
  $region3: #{gcn3_forward.5} parent=0 // pred_check_branch
    %13 = sbr.rel (0) target = $region5
  $region4: #{gcn3_forward.5} parent=0 // pred_region
    _
  $region5: #{gcn3_forward.5} parent=0 // pred_fallthru
    _
  // Predicated region
  $region6: #{gcn3_forward.5} parent=0 // pred_check
    _
  $region7: #{gcn3_forward.5} parent=0 // pred_check_branch
    %15 = sbr.rel (0) target = $region9
  $region8: #{gcn3_forward.5} parent=0 // pred_region
    _
  $region9: #{gcn3_forward.5} parent=0 // pred_fallthru
    _
  // Predicated region
  $region10: #{gcn3_forward.5} parent=0 // pred_check
    _
  $region11: #{gcn3_forward.5} parent=0 // pred_check_branch
    %17 = sbr.rel (0) target = $region13
  $region12: #{gcn3_forward.5} parent=0 // pred_region
    _
  $region13: #{gcn3_forward.5} parent=0 // pred_fallthru
    _
  // Predicated region
  $region14: #{gcn3_forward.5} parent=0 // pred_check
    _
  $region15: #{gcn3_forward.5} parent=0 // pred_check_branch
    %19 = sbr.rel (0) target = $region17
  $region16: #{gcn3_forward.5} parent=0 // pred_region
    _
  $region17: #{gcn3_forward.5} parent=0 // pred_fallthru
    _
  // Predicated region
  $region18: #{gcn3_forward.5} parent=0 // pred_check
    _
  $region19: #{gcn3_forward.5} parent=0 // pred_check_branch
    %21 = sbr.rel (0) target = $region21
  $region20: #{gcn3_forward.5} parent=0 // pred_region
    _
  $region21: #{gcn3_forward.5} parent=0 // pred_fallthru
    _
  %p23 = scmp.eq.s32.totalorder 0, 0
  // Predicated region
  $region22: #{gcn3_forward.5} parent=0 // pred_check
    %p24 = pneg %p23
  $region23: #{gcn3_forward.5} parent=0 // pred_check_branch
    %26 = sbr.rel (%p24) target = $region25
  $region24: #{gcn3_forward.5} parent=0 // pred_region
    %27 = vst [vmem:[#allocation2] sm:$0xff] 0.0
    %28 = vst [vmem:[#allocation2 + $0x8] sm:$0xff] 0.0
    %29 = vst [vmem:[#allocation2 + $0x10] sm:$0xff] 0.0
    %30 = vst [vmem:[#allocation2 + $0x18] sm:$0xff] 0.0
    %31 = vst [vmem:[#allocation2 + $0x20] sm:$0xff] 0.0
    %32 = vst [vmem:[#allocation2 + $0x28] sm:$0xff] 0.0
    %33 = vst [vmem:[#allocation2 + $0x30] sm:$0xff] 0.0
    %34 = vst [vmem:[#allocation2 + $0x38] sm:$0xff] 0.0
    %35 = vst [vmem:[#allocation2 + $0x40] sm:$0xff] 0.0
    %36 = vst [vmem:[#allocation2 + $0x48] sm:$0xff] 0.0
    %37 = vst [vmem:[#allocation2 + $0x50] sm:$0xff] 0.0
    %38 = vst [vmem:[#allocation2 + $0x58] sm:$0xff] 0.0
    %39 = vst [vmem:[#allocation2 + $0x60] sm:$0xff] 0.0
    %40 = vst [vmem:[#allocation2 + $0x68] sm:$0xff] 0.0
    %41 = vst [vmem:[#allocation2 + $0x70] sm:$0xff] 0.0
    %42 = vst [vmem:[#allocation2 + $0x78] sm:$0xff] 0.0
  $region25: #{gcn3_forward.5} parent=0 // pred_fallthru
    _
  %v43 = vld [vmem:[#allocation2] sm:$0xff]
  %v44 = vld [vmem:[#allocation2 + $0x8] sm:$0xff]
  %v45 = vld [vmem:[#allocation2 + $0x10] sm:$0xff]
  %v46 = vld [vmem:[#allocation2 + $0x18] sm:$0xff]
  %v47 = vld [vmem:[#allocation2 + $0x20] sm:$0xff]
  %v48 = vld [vmem:[#allocation2 + $0x28] sm:$0xff]
  %v49 = vld [vmem:[#allocation2 + $0x30] sm:$0xff]
  %v50 = vld [vmem:[#allocation2 + $0x38] sm:$0xff]
  %v51 = vld [vmem:[#allocation2 + $0x40] sm:$0xff]
  %v52 = vld [vmem:[#allocation2 + $0x48] sm:$0xff]
  %v53 = vld [vmem:[#allocation2 + $0x50] sm:$0xff]
  %v54 = vld [vmem:[#allocation2 + $0x58] sm:$0xff]
  %v55 = vld [vmem:[#allocation2 + $0x60] sm:$0xff]
  %v56 = vld [vmem:[#allocation2 + $0x68] sm:$0xff]
  %v57 = vld [vmem:[#allocation2 + $0x70] sm:$0xff]
  %v58 = vld [vmem:[#allocation2 + $0x78] sm:$0xff]
  %v59 = vld [vmem:[%s0] sm:$0xf]
  %v60 = vld [vmem:[%s0 + $0x4] sm:$0xf]
  %v61 = vld [vmem:[%s0 + $0x8] sm:$0xf]
  %v62 = vld [vmem:[%s0 + $0xc] sm:$0xf]
  %v63 = vld [vmem:[%s0 + $0x10] sm:$0xf]
  %v64 = vld [vmem:[%s0 + $0x14] sm:$0xf]
  %v65 = vld [vmem:[%s0 + $0x18] sm:$0xf]
  %v66 = vld [vmem:[%s0 + $0x1c] sm:$0xf]
  %v67 = vld [vmem:[%s0 + $0x20] sm:$0xf]
  %v68 = vld [vmem:[%s0 + $0x24] sm:$0xf]
  %v69 = vld [vmem:[%s0 + $0x28] sm:$0xf]
  %v70 = vld [vmem:[%s0 + $0x2c] sm:$0xf]
  %v71 = vld [vmem:[%s0 + $0x30] sm:$0xf]
  %v72 = vld [vmem:[%s0 + $0x34] sm:$0xf]
  %v73 = vld [vmem:[%s0 + $0x38] sm:$0xf]
  %v74 = vld [vmem:[%s0 + $0x3c] sm:$0xf]
  %v75 = vld [vmem:[%s1] sm:$0xf]
  %v76 = vld [vmem:[%s1 + $0x4] sm:$0xf]
  %v77 = vld [vmem:[%s1 + $0x8] sm:$0xf]
  %v78 = vld [vmem:[%s1 + $0xc] sm:$0xf]
  %v79 = vld [vmem:[%s1 + $0x10] sm:$0xf]
  %v80 = vld [vmem:[%s1 + $0x14] sm:$0xf]
  %v81 = vld [vmem:[%s1 + $0x18] sm:$0xf]
  %v82 = vld [vmem:[%s1 + $0x1c] sm:$0xf]
  %v83 = vld [vmem:[%s1 + $0x20] sm:$0xf]
  %v84 = vld [vmem:[%s1 + $0x24] sm:$0xf]
  %v85 = vld [vmem:[%s1 + $0x28] sm:$0xf]
  %v86 = vld [vmem:[%s1 + $0x2c] sm:$0xf]
  %v87 = vld [vmem:[%s1 + $0x30] sm:$0xf]
  %v88 = vld [vmem:[%s1 + $0x34] sm:$0xf]
  %v89 = vld [vmem:[%s1 + $0x38] sm:$0xf]
  %v90 = vld [vmem:[%s1 + $0x3c] sm:$0xf]
  %v107 = vunpack.c.l.b16 %v59
  %v108 = vunpack.c.l.b16 %v60
  %v109 = vunpack.c.l.b16 %v61
  %v110 = vunpack.c.l.b16 %v62
  %v111 = vunpack.c.l.b16 %v63
  %v112 = vunpack.c.l.b16 %v64
  %v113 = vunpack.c.l.b16 %v65
  %v114 = vunpack.c.l.b16 %v66
  %v115 = vunpack.c.l.b16 %v67
  %v116 = vunpack.c.l.b16 %v68
  %v117 = vunpack.c.l.b16 %v69
  %v118 = vunpack.c.l.b16 %v70
  %v119 = vunpack.c.l.b16 %v71
  %v120 = vunpack.c.l.b16 %v72
  %v121 = vunpack.c.l.b16 %v73
  %v122 = vunpack.c.l.b16 %v74
  %v123 = vpack.c.b16 %v108, %v107
  %v124 = vpack.c.b16 %v110, %v109
  %v125 = vpack.c.b16 %v112, %v111
  %v126 = vpack.c.b16 %v114, %v113
  %v127 = vpack.c.b16 %v116, %v115
  %v128 = vpack.c.b16 %v118, %v117
  %v129 = vpack.c.b16 %v120, %v119
  %v130 = vpack.c.b16 %v122, %v121
  %v155 = vunpack.c.l.b16 %v75
  %v156 = vunpack.c.l.b16 %v76
  %v157 = vunpack.c.l.b16 %v77
  %v158 = vunpack.c.l.b16 %v78
  %v159 = vunpack.c.l.b16 %v79
  %v160 = vunpack.c.l.b16 %v80
  %v161 = vunpack.c.l.b16 %v81
  %v162 = vunpack.c.l.b16 %v82
  %v163 = vunpack.c.l.b16 %v83
  %v164 = vunpack.c.l.b16 %v84
  %v165 = vunpack.c.l.b16 %v85
  %v166 = vunpack.c.l.b16 %v86
  %v167 = vunpack.c.l.b16 %v87
  %v168 = vunpack.c.l.b16 %v88
  %v169 = vunpack.c.l.b16 %v89
  %v170 = vunpack.c.l.b16 %v90
  %v171 = vpack.c.b16 %v156, %v155
  %v172 = vpack.c.b16 %v158, %v157
  %v173 = vpack.c.b16 %v160, %v159
  %v174 = vpack.c.b16 %v162, %v161
  %v175 = vpack.c.b16 %v164, %v163
  %v176 = vpack.c.b16 %v166, %v165
  %v177 = vpack.c.b16 %v168, %v167
  %v178 = vpack.c.b16 %v170, %v169
  %187 = vmatprep.subr.bf16.mxu0 0
  %188 = vmatpush1.bf16.msra.mxu0 %v171
  %189 = vmatprep.subr.bf16.mxu0 0
  %190 = vmatpush1.bf16.msra.mxu0 %v172
  %191 = vmatprep.subr.bf16.mxu0 0
  %192 = vmatpush1.bf16.msra.mxu0 %v173
  %193 = vmatprep.subr.bf16.mxu0 0
  %194 = vmatpush1.bf16.msra.mxu0 %v174
  %195 = vmatprep.subr.bf16.mxu0 0
  %196 = vmatpush1.bf16.msra.mxu0 %v175
  %197 = vmatprep.subr.bf16.mxu0 0
  %198 = vmatpush1.bf16.msra.mxu0 %v176
  %199 = vmatprep.subr.bf16.mxu0 0
  %200 = vmatpush1.bf16.msra.mxu0 %v177
  %201 = vmatprep.subr.bf16.mxu0 0
  %202 = vmatpush1.bf16.msra.mxu0 %v178
  %203 = vmatprep.subr.bf16.mxu0 0
  %204 = vmatpush1.bf16.msra.mxu0 0
  %205 = vmatprep.subr.bf16.mxu0 0
  %206 = vmatpush1.bf16.msra.mxu0 0
  %207 = vmatprep.subr.bf16.mxu0 0
  %208 = vmatpush1.bf16.msra.mxu0 0
  %209 = vmatprep.subr.bf16.mxu0 0
  %210 = vmatpush1.bf16.msra.mxu0 0
  %211 = vmatprep.subr.bf16.mxu0 0
  %212 = vmatpush1.bf16.msra.mxu0 0
  %213 = vmatprep.subr.bf16.mxu0 0
  %214 = vmatpush1.bf16.msra.mxu0 0
  %215 = vmatprep.subr.bf16.mxu0 0
  %216 = vmatpush1.bf16.msra.mxu0 0
  %217 = vmatprep.subr.bf16.mxu0 0
  %218 = vmatpush1.bf16.msra.mxu0 0
  %219 = vmatprep.mubr.bf16.mxu0 0
  %220 = vmatmul.mubr.bf16.gmra.mrb[0].mxu0 %v123
  %v221 = vpop.f32.mrb[0].mxu0
  %v222 = vadd.f32 0.0, %v221
  %v223 = vpop.f32.mrb[0].mxu0
  %v224 = vpop.f32.mrb[0].mxu0
  %v225 = vadd.f32 0.0, %v224
  %v226 = vpop.f32.mrb[0].mxu0
  %227 = vmatprep.mubr.bf16.mxu0 0
  %228 = vmatmul.mubr.bf16.gmra.mrb[0].mxu0 %v124
  %v229 = vpop.f32.mrb[0].mxu0
  %v230 = vadd.f32 0.0, %v229
  %v231 = vpop.f32.mrb[0].mxu0
  %v232 = vpop.f32.mrb[0].mxu0
  %v233 = vadd.f32 0.0, %v232
  %v234 = vpop.f32.mrb[0].mxu0
  %235 = vmatprep.mubr.bf16.mxu0 0
  %236 = vmatmul.mubr.bf16.gmra.mrb[0].mxu0 %v125
  %v237 = vpop.f32.mrb[0].mxu0
  %v238 = vadd.f32 0.0, %v237
  %v239 = vpop.f32.mrb[0].mxu0
  %v240 = vpop.f32.mrb[0].mxu0
  %v241 = vadd.f32 0.0, %v240
  %v242 = vpop.f32.mrb[0].mxu0
  %243 = vmatprep.mubr.bf16.mxu0 0
  %244 = vmatmul.mubr.bf16.gmra.mrb[0].mxu0 %v126
  %v245 = vpop.f32.mrb[0].mxu0
  %v246 = vadd.f32 0.0, %v245
  %v247 = vpop.f32.mrb[0].mxu0
  %v248 = vpop.f32.mrb[0].mxu0
  %v249 = vadd.f32 0.0, %v248
  %v250 = vpop.f32.mrb[0].mxu0
  %251 = vmatprep.mubr.bf16.mxu0 0
  %252 = vmatmul.mubr.bf16.gmra.mrb[0].mxu0 %v127
  %v253 = vpop.f32.mrb[0].mxu0
  %v254 = vadd.f32 0.0, %v253
  %v255 = vpop.f32.mrb[0].mxu0
  %v256 = vpop.f32.mrb[0].mxu0
  %v257 = vadd.f32 0.0, %v256
  %v258 = vpop.f32.mrb[0].mxu0
  %259 = vmatprep.mubr.bf16.mxu0 0
  %260 = vmatmul.mubr.bf16.gmra.mrb[0].mxu0 %v128
  %v261 = vpop.f32.mrb[0].mxu0
  %v262 = vadd.f32 0.0, %v261
  %v263 = vpop.f32.mrb[0].mxu0
  %v264 = vpop.f32.mrb[0].mxu0
  %v265 = vadd.f32 0.0, %v264
  %v266 = vpop.f32.mrb[0].mxu0
  %267 = vmatprep.mubr.bf16.mxu0 0
  %268 = vmatmul.mubr.bf16.gmra.mrb[0].mxu0 %v129
  %v269 = vpop.f32.mrb[0].mxu0
  %v270 = vadd.f32 0.0, %v269
  %v271 = vpop.f32.mrb[0].mxu0
  %v272 = vpop.f32.mrb[0].mxu0
  %v273 = vadd.f32 0.0, %v272
  %v274 = vpop.f32.mrb[0].mxu0
  %275 = vmatprep.mubr.bf16.mxu0 0
  %276 = vmatmul.mubr.bf16.gmra.mrb[0].mxu0 %v130
  %v277 = vpop.f32.mrb[0].mxu0
  %v278 = vadd.f32 0.0, %v277
  %v279 = vpop.f32.mrb[0].mxu0
  %v280 = vpop.f32.mrb[0].mxu0
  %v281 = vadd.f32 0.0, %v280
  %v282 = vpop.f32.mrb[0].mxu0
  %283 = vdwg.mxu0
  %v284 = vadd.f32 %v43, %v222
  %v285 = vadd.f32 %v44, %v225
  %v286 = vadd.f32 %v45, %v230
  %v287 = vadd.f32 %v46, %v233
  %v288 = vadd.f32 %v47, %v238
  %v289 = vadd.f32 %v48, %v241
  %v290 = vadd.f32 %v49, %v246
  %v291 = vadd.f32 %v50, %v249
  %v292 = vadd.f32 %v51, %v254
  %v293 = vadd.f32 %v52, %v257
  %v294 = vadd.f32 %v53, %v262
  %v295 = vadd.f32 %v54, %v265
  %v296 = vadd.f32 %v55, %v270
  %v297 = vadd.f32 %v56, %v273
  %v298 = vadd.f32 %v57, %v278
  %v299 = vadd.f32 %v58, %v281
  %300 = vst [vmem:[#allocation2] sm:$0xff] %v284
  %301 = vst [vmem:[#allocation2 + $0x8] sm:$0xff] %v285
  %302 = vst [vmem:[#allocation2 + $0x10] sm:$0xff] %v286
  %303 = vst [vmem:[#allocation2 + $0x18] sm:$0xff] %v287
  %304 = vst [vmem:[#allocation2 + $0x20] sm:$0xff] %v288
  %305 = vst [vmem:[#allocation2 + $0x28] sm:$0xff] %v289
  %306 = vst [vmem:[#allocation2 + $0x30] sm:$0xff] %v290
  %307 = vst [vmem:[#allocation2 + $0x38] sm:$0xff] %v291
  %308 = vst [vmem:[#allocation2 + $0x40] sm:$0xff] %v292
  %309 = vst [vmem:[#allocation2 + $0x48] sm:$0xff] %v293
  %310 = vst [vmem:[#allocation2 + $0x50] sm:$0xff] %v294
  %311 = vst [vmem:[#allocation2 + $0x58] sm:$0xff] %v295
  %312 = vst [vmem:[#allocation2 + $0x60] sm:$0xff] %v296
  %313 = vst [vmem:[#allocation2 + $0x68] sm:$0xff] %v297
  %314 = vst [vmem:[#allocation2 + $0x70] sm:$0xff] %v298
  %315 = vst [vmem:[#allocation2 + $0x78] sm:$0xff] %v299
  // Predicated region
  $region26: #{gcn3_forward.5} parent=0 // pred_check
    %p316 = pneg %p23
  $region27: #{gcn3_forward.5} parent=0 // pred_check_branch
    %318 = sbr.rel (%p316) target = $region29
  $region28: #{gcn3_forward.5} parent=0 // pred_region
    %v319 = vld [vmem:[#allocation2] sm:$0xff]
    %v320 = vld [vmem:[#allocation2 + $0x8] sm:$0xff]
    %v321 = vld [vmem:[#allocation2 + $0x10] sm:$0xff]
    %v322 = vld [vmem:[#allocation2 + $0x18] sm:$0xff]
    %v323 = vld [vmem:[#allocation2 + $0x20] sm:$0xff]
    %v324 = vld [vmem:[#allocation2 + $0x28] sm:$0xff]
    %v325 = vld [vmem:[#allocation2 + $0x30] sm:$0xff]
    %v326 = vld [vmem:[#allocation2 + $0x38] sm:$0xff]
    %v327 = vld [vmem:[#allocation2 + $0x40] sm:$0xff]
    %v328 = vld [vmem:[#allocation2 + $0x48] sm:$0xff]
    %v329 = vld [vmem:[#allocation2 + $0x50] sm:$0xff]
    %v330 = vld [vmem:[#allocation2 + $0x58] sm:$0xff]
    %v331 = vld [vmem:[#allocation2 + $0x60] sm:$0xff]
    %v332 = vld [vmem:[#allocation2 + $0x68] sm:$0xff]
    %v333 = vld [vmem:[#allocation2 + $0x70] sm:$0xff]
    %v334 = vld [vmem:[#allocation2 + $0x78] sm:$0xff]
    %v335 = vld [vmem:[%s2] sm:$0xff]
    %v336 = vld [vmem:[%s2 + $0x8] sm:$0xff]
    %v337 = vld [vmem:[%s2 + $0x10] sm:$0xff]
    %v338 = vld [vmem:[%s2 + $0x18] sm:$0xff]
    %v339 = vld [vmem:[%s2 + $0x20] sm:$0xff]
    %v340 = vld [vmem:[%s2 + $0x28] sm:$0xff]
    %v341 = vld [vmem:[%s2 + $0x30] sm:$0xff]
    %v342 = vld [vmem:[%s2 + $0x38] sm:$0xff]
    %v343 = vld [vmem:[%s2 + $0x40] sm:$0xff]
    %v344 = vld [vmem:[%s2 + $0x48] sm:$0xff]
    %v345 = vld [vmem:[%s2 + $0x50] sm:$0xff]
    %v346 = vld [vmem:[%s2 + $0x58] sm:$0xff]
    %v347 = vld [vmem:[%s2 + $0x60] sm:$0xff]
    %v348 = vld [vmem:[%s2 + $0x68] sm:$0xff]
    %v349 = vld [vmem:[%s2 + $0x70] sm:$0xff]
    %v350 = vld [vmem:[%s2 + $0x78] sm:$0xff]
    %352 = vset.pattern.permute.xlu0 0
    %353 = vperm.xlu0 %352, %v335
    %v354 = vpop.permute.xlu0 %353
    %357 = vset.pattern.permute.xlu0 0
    %358 = vperm.xlu0 %357, %v336
    %v359 = vpop.permute.xlu0 %358
    %362 = vset.pattern.permute.xlu0 0
    %363 = vperm.xlu0 %362, %v337
    %v364 = vpop.permute.xlu0 %363
    %367 = vset.pattern.permute.xlu0 0
    %368 = vperm.xlu0 %367, %v338
    %v369 = vpop.permute.xlu0 %368
    %372 = vset.pattern.permute.xlu0 0
    %373 = vperm.xlu0 %372, %v339
    %v374 = vpop.permute.xlu0 %373
    %377 = vset.pattern.permute.xlu0 0
    %378 = vperm.xlu0 %377, %v340
    %v379 = vpop.permute.xlu0 %378
    %382 = vset.pattern.permute.xlu0 0
    %383 = vperm.xlu0 %382, %v341
    %v384 = vpop.permute.xlu0 %383
    %387 = vset.pattern.permute.xlu0 0
    %388 = vperm.xlu0 %387, %v342
    %v389 = vpop.permute.xlu0 %388
    %392 = vset.pattern.permute.xlu0 0
    %393 = vperm.xlu0 %392, %v343
    %v394 = vpop.permute.xlu0 %393
    %397 = vset.pattern.permute.xlu0 0
    %398 = vperm.xlu0 %397, %v344
    %v399 = vpop.permute.xlu0 %398
    %402 = vset.pattern.permute.xlu0 0
    %403 = vperm.xlu0 %402, %v345
    %v404 = vpop.permute.xlu0 %403
    %407 = vset.pattern.permute.xlu0 0
    %408 = vperm.xlu0 %407, %v346
    %v409 = vpop.permute.xlu0 %408
    %412 = vset.pattern.permute.xlu0 0
    %413 = vperm.xlu0 %412, %v347
    %v414 = vpop.permute.xlu0 %413
    %417 = vset.pattern.permute.xlu0 0
    %418 = vperm.xlu0 %417, %v348
    %v419 = vpop.permute.xlu0 %418
    %422 = vset.pattern.permute.xlu0 0
    %423 = vperm.xlu0 %422, %v349
    %v424 = vpop.permute.xlu0 %423
    %427 = vset.pattern.permute.xlu0 0
    %428 = vperm.xlu0 %427, %v350
    %v429 = vpop.permute.xlu0 %428
    %v431 = vmul.f32 %v319, %v354
    %v432 = vmul.f32 %v320, %v359
    %v433 = vmul.f32 %v321, %v364
    %v434 = vmul.f32 %v322, %v369
    %v435 = vmul.f32 %v323, %v374
    %v436 = vmul.f32 %v324, %v379
    %v437 = vmul.f32 %v325, %v384
    %v438 = vmul.f32 %v326, %v389
    %v439 = vmul.f32 %v327, %v394
    %v440 = vmul.f32 %v328, %v399
    %v441 = vmul.f32 %v329, %v404
    %v442 = vmul.f32 %v330, %v409
    %v443 = vmul.f32 %v331, %v414
    %v444 = vmul.f32 %v332, %v419
    %v445 = vmul.f32 %v333, %v424
    %v446 = vmul.f32 %v334, %v429
    %v447 = vld [vmem:[%s3] sm:$0x1]
    %v449 = vlaneseq
    %v450 = vshrl.u32 %v449, 7
    %v451 = vsub.s32 0, %v450
    %v452 = vrot.slane %v447, %v451
    %v454 = vadd.f32 %v431, %v452
    %v455 = vadd.f32 %v432, %v452
    %v456 = vadd.f32 %v433, %v452
    %v457 = vadd.f32 %v434, %v452
    %v458 = vadd.f32 %v435, %v452
    %v459 = vadd.f32 %v436, %v452
    %v460 = vadd.f32 %v437, %v452
    %v461 = vadd.f32 %v438, %v452
    %v462 = vadd.f32 %v439, %v452
    %v463 = vadd.f32 %v440, %v452
    %v464 = vadd.f32 %v441, %v452
    %v465 = vadd.f32 %v442, %v452
    %v466 = vadd.f32 %v443, %v452
    %v467 = vadd.f32 %v444, %v452
    %v468 = vadd.f32 %v445, %v452
    %v469 = vadd.f32 %v446, %v452
    %v470 = vmax.f32 %v454, 0.0
    %v471 = vmax.f32 %v455, 0.0
    %v472 = vmax.f32 %v456, 0.0
    %v473 = vmax.f32 %v457, 0.0
    %v474 = vmax.f32 %v458, 0.0
    %v475 = vmax.f32 %v459, 0.0
    %v476 = vmax.f32 %v460, 0.0
    %v477 = vmax.f32 %v461, 0.0
    %v478 = vmax.f32 %v462, 0.0
    %v479 = vmax.f32 %v463, 0.0
    %v480 = vmax.f32 %v464, 0.0
    %v481 = vmax.f32 %v465, 0.0
    %v482 = vmax.f32 %v466, 0.0
    %v483 = vmax.f32 %v467, 0.0
    %v484 = vmax.f32 %v468, 0.0
    %v485 = vmax.f32 %v469, 0.0
    %v486 = vpack.c.bf16 %v471, %v470
    %v487 = vpack.c.bf16 %v473, %v472
    %v488 = vpack.c.bf16 %v475, %v474
    %v489 = vpack.c.bf16 %v477, %v476
    %v490 = vpack.c.bf16 %v479, %v478
    %v491 = vpack.c.bf16 %v481, %v480
    %v492 = vpack.c.bf16 %v483, %v482
    %v493 = vpack.c.bf16 %v485, %v484
    %v502 = vunpack.c.l.b16 %v486
    %v503 = vunpack.c.h.b16 %v486
    %v504 = vunpack.c.l.b16 %v487
    %v505 = vunpack.c.h.b16 %v487
    %v506 = vunpack.c.l.b16 %v488
    %v507 = vunpack.c.h.b16 %v488
    %v508 = vunpack.c.l.b16 %v489
    %v509 = vunpack.c.h.b16 %v489
    %v510 = vunpack.c.l.b16 %v490
    %v511 = vunpack.c.h.b16 %v490
    %v512 = vunpack.c.l.b16 %v491
    %v513 = vunpack.c.h.b16 %v491
    %v514 = vunpack.c.l.b16 %v492
    %v515 = vunpack.c.h.b16 %v492
    %v516 = vunpack.c.l.b16 %v493
    %v517 = vunpack.c.h.b16 %v493
    %v518 = vpack.c.b16 %v502, %v502
    %v519 = vpack.c.b16 %v503, %v503
    %v520 = vpack.c.b16 %v504, %v504
    %v521 = vpack.c.b16 %v505, %v505
    %v522 = vpack.c.b16 %v506, %v506
    %v523 = vpack.c.b16 %v507, %v507
    %v524 = vpack.c.b16 %v508, %v508
    %v525 = vpack.c.b16 %v509, %v509
    %v526 = vpack.c.b16 %v510, %v510
    %v527 = vpack.c.b16 %v511, %v511
    %v528 = vpack.c.b16 %v512, %v512
    %v529 = vpack.c.b16 %v513, %v513
    %v530 = vpack.c.b16 %v514, %v514
    %v531 = vpack.c.b16 %v515, %v515
    %v532 = vpack.c.b16 %v516, %v516
    %v533 = vpack.c.b16 %v517, %v517
    %550 = vst [vmem:[%s5] sm:$0xf] %v518
    %551 = vst [vmem:[%s5 + $0x4] sm:$0xf] %v519
    %552 = vst [vmem:[%s5 + $0x8] sm:$0xf] %v520
    %553 = vst [vmem:[%s5 + $0xc] sm:$0xf] %v521
    %554 = vst [vmem:[%s5 + $0x10] sm:$0xf] %v522
    %555 = vst [vmem:[%s5 + $0x14] sm:$0xf] %v523
    %556 = vst [vmem:[%s5 + $0x18] sm:$0xf] %v524
    %557 = vst [vmem:[%s5 + $0x1c] sm:$0xf] %v525
    %558 = vst [vmem:[%s5 + $0x20] sm:$0xf] %v526
    %559 = vst [vmem:[%s5 + $0x24] sm:$0xf] %v527
    %560 = vst [vmem:[%s5 + $0x28] sm:$0xf] %v528
    %561 = vst [vmem:[%s5 + $0x2c] sm:$0xf] %v529
    %562 = vst [vmem:[%s5 + $0x30] sm:$0xf] %v530
    %563 = vst [vmem:[%s5 + $0x34] sm:$0xf] %v531
    %564 = vst [vmem:[%s5 + $0x38] sm:$0xf] %v532
    %565 = vst [vmem:[%s5 + $0x3c] sm:$0xf] %v533
    %v566 = vld [vmem:[%s4] sm:$0xf]
    %v567 = vld [vmem:[%s4 + $0x4] sm:$0xf]
    %v568 = vld [vmem:[%s4 + $0x8] sm:$0xf]
    %v569 = vld [vmem:[%s4 + $0xc] sm:$0xf]
    %v570 = vld [vmem:[%s4 + $0x10] sm:$0xf]
    %v571 = vld [vmem:[%s4 + $0x14] sm:$0xf]
    %v572 = vld [vmem:[%s4 + $0x18] sm:$0xf]
    %v573 = vld [vmem:[%s4 + $0x1c] sm:$0xf]
    %v574 = vld [vmem:[%s4 + $0x20] sm:$0xf]
    %v575 = vld [vmem:[%s4 + $0x24] sm:$0xf]
    %v576 = vld [vmem:[%s4 + $0x28] sm:$0xf]
    %v577 = vld [vmem:[%s4 + $0x2c] sm:$0xf]
    %v578 = vld [vmem:[%s4 + $0x30] sm:$0xf]
    %v579 = vld [vmem:[%s4 + $0x34] sm:$0xf]
    %v580 = vld [vmem:[%s4 + $0x38] sm:$0xf]
    %v581 = vld [vmem:[%s4 + $0x3c] sm:$0xf]
    %v598 = vunpack.c.l.b16 %v566
    %v599 = vunpack.c.l.b16 %v567
    %v600 = vunpack.c.l.b16 %v568
    %v601 = vunpack.c.l.b16 %v569
    %v602 = vunpack.c.l.b16 %v570
    %v603 = vunpack.c.l.b16 %v571
    %v604 = vunpack.c.l.b16 %v572
    %v605 = vunpack.c.l.b16 %v573
    %v606 = vunpack.c.l.b16 %v574
    %v607 = vunpack.c.l.b16 %v575
    %v608 = vunpack.c.l.b16 %v576
    %v609 = vunpack.c.l.b16 %v577
    %v610 = vunpack.c.l.b16 %v578
    %v611 = vunpack.c.l.b16 %v579
    %v612 = vunpack.c.l.b16 %v580
    %v613 = vunpack.c.l.b16 %v581
    %v614 = vpack.c.b16 %v599, %v598
    %v615 = vpack.c.b16 %v601, %v600
    %v616 = vpack.c.b16 %v603, %v602
    %v617 = vpack.c.b16 %v605, %v604
    %v618 = vpack.c.b16 %v607, %v606
    %v619 = vpack.c.b16 %v609, %v608
    %v620 = vpack.c.b16 %v611, %v610
    %v621 = vpack.c.b16 %v613, %v612
    %630 = vmatprep.subr.bf16.mxu0 0
    %631 = vmatpush1.bf16.msra.mxu0 %v614
    %632 = vmatprep.subr.bf16.mxu0 0
    %633 = vmatpush1.bf16.msra.mxu0 %v615
    %634 = vmatprep.subr.bf16.mxu0 0
    %635 = vmatpush1.bf16.msra.mxu0 %v616
    %636 = vmatprep.subr.bf16.mxu0 0
    %637 = vmatpush1.bf16.msra.mxu0 %v617
    %638 = vmatprep.subr.bf16.mxu0 0
    %639 = vmatpush1.bf16.msra.mxu0 %v618
    %640 = vmatprep.subr.bf16.mxu0 0
    %641 = vmatpush1.bf16.msra.mxu0 %v619
    %642 = vmatprep.subr.bf16.mxu0 0
    %643 = vmatpush1.bf16.msra.mxu0 %v620
    %644 = vmatprep.subr.bf16.mxu0 0
    %645 = vmatpush1.bf16.msra.mxu0 %v621
    %646 = vmatprep.subr.bf16.mxu0 0
    %647 = vmatpush1.bf16.msra.mxu0 0
    %648 = vmatprep.subr.bf16.mxu0 0
    %649 = vmatpush1.bf16.msra.mxu0 0
    %650 = vmatprep.subr.bf16.mxu0 0
    %651 = vmatpush1.bf16.msra.mxu0 0
    %652 = vmatprep.subr.bf16.mxu0 0
    %653 = vmatpush1.bf16.msra.mxu0 0
    %654 = vmatprep.subr.bf16.mxu0 0
    %655 = vmatpush1.bf16.msra.mxu0 0
    %656 = vmatprep.subr.bf16.mxu0 0
    %657 = vmatpush1.bf16.msra.mxu0 0
    %658 = vmatprep.subr.bf16.mxu0 0
    %659 = vmatpush1.bf16.msra.mxu0 0
    %660 = vmatprep.subr.bf16.mxu0 0
    %661 = vmatpush1.bf16.msra.mxu0 0
    %662 = vmatprep.mubr.bf16.mxu0 0
    %663 = vmatmul.mubr.bf16.gmra.mrb[0].mxu0 %v486
    %v664 = vpop.f32.mrb[0].mxu0
    %v665 = vadd.f32 0.0, %v664
    %v666 = vpop.f32.mrb[0].mxu0
    %v667 = vpop.f32.mrb[0].mxu0
    %v668 = vadd.f32 0.0, %v667
    %v669 = vpop.f32.mrb[0].mxu0
    %670 = vmatprep.mubr.bf16.mxu0 0
    %671 = vmatmul.mubr.bf16.gmra.mrb[0].mxu0 %v487
    %v672 = vpop.f32.mrb[0].mxu0
    %v673 = vadd.f32 0.0, %v672
    %v674 = vpop.f32.mrb[0].mxu0
    %v675 = vpop.f32.mrb[0].mxu0
    %v676 = vadd.f32 0.0, %v675
    %v677 = vpop.f32.mrb[0].mxu0
    %678 = vmatprep.mubr.bf16.mxu0 0
    %679 = vmatmul.mubr.bf16.gmra.mrb[0].mxu0 %v488
    %v680 = vpop.f32.mrb[0].mxu0
    %v681 = vadd.f32 0.0, %v680
    %v682 = vpop.f32.mrb[0].mxu0
    %v683 = vpop.f32.mrb[0].mxu0
    %v684 = vadd.f32 0.0, %v683
    %v685 = vpop.f32.mrb[0].mxu0
    %686 = vmatprep.mubr.bf16.mxu0 0
    %687 = vmatmul.mubr.bf16.gmra.mrb[0].mxu0 %v489
    %v688 = vpop.f32.mrb[0].mxu0
    %v689 = vadd.f32 0.0, %v688
    %v690 = vpop.f32.mrb[0].mxu0
    %v691 = vpop.f32.mrb[0].mxu0
    %v692 = vadd.f32 0.0, %v691
    %v693 = vpop.f32.mrb[0].mxu0
    %694 = vmatprep.mubr.bf16.mxu0 0
    %695 = vmatmul.mubr.bf16.gmra.mrb[0].mxu0 %v490
    %v696 = vpop.f32.mrb[0].mxu0
    %v697 = vadd.f32 0.0, %v696
    %v698 = vpop.f32.mrb[0].mxu0
    %v699 = vpop.f32.mrb[0].mxu0
    %v700 = vadd.f32 0.0, %v699
    %v701 = vpop.f32.mrb[0].mxu0
    %702 = vmatprep.mubr.bf16.mxu0 0
    %703 = vmatmul.mubr.bf16.gmra.mrb[0].mxu0 %v491
    %v704 = vpop.f32.mrb[0].mxu0
    %v705 = vadd.f32 0.0, %v704
    %v706 = vpop.f32.mrb[0].mxu0
    %v707 = vpop.f32.mrb[0].mxu0
    %v708 = vadd.f32 0.0, %v707
    %v709 = vpop.f32.mrb[0].mxu0
    %710 = vmatprep.mubr.bf16.mxu0 0
    %711 = vmatmul.mubr.bf16.gmra.mrb[0].mxu0 %v492
    %v712 = vpop.f32.mrb[0].mxu0
    %v713 = vadd.f32 0.0, %v712
    %v714 = vpop.f32.mrb[0].mxu0
    %v715 = vpop.f32.mrb[0].mxu0
    %v716 = vadd.f32 0.0, %v715
    %v717 = vpop.f32.mrb[0].mxu0
    %718 = vmatprep.mubr.bf16.mxu0 0
    %719 = vmatmul.mubr.bf16.gmra.mrb[0].mxu0 %v493
    %v720 = vpop.f32.mrb[0].mxu0
    %v721 = vadd.f32 0.0, %v720
    %v722 = vpop.f32.mrb[0].mxu0
    %v723 = vpop.f32.mrb[0].mxu0
    %v724 = vadd.f32 0.0, %v723
    %v725 = vpop.f32.mrb[0].mxu0
    %726 = vdwg.mxu0
    %v727 = vld [vmem:[%s2] sm:$0xff]
    %v728 = vld [vmem:[%s2 + $0x8] sm:$0xff]
    %v729 = vld [vmem:[%s2 + $0x10] sm:$0xff]
    %v730 = vld [vmem:[%s2 + $0x18] sm:$0xff]
    %v731 = vld [vmem:[%s2 + $0x20] sm:$0xff]
    %v732 = vld [vmem:[%s2 + $0x28] sm:$0xff]
    %v733 = vld [vmem:[%s2 + $0x30] sm:$0xff]
    %v734 = vld [vmem:[%s2 + $0x38] sm:$0xff]
    %v735 = vld [vmem:[%s2 + $0x40] sm:$0xff]
    %v736 = vld [vmem:[%s2 + $0x48] sm:$0xff]
    %v737 = vld [vmem:[%s2 + $0x50] sm:$0xff]
    %v738 = vld [vmem:[%s2 + $0x58] sm:$0xff]
    %v739 = vld [vmem:[%s2 + $0x60] sm:$0xff]
    %v740 = vld [vmem:[%s2 + $0x68] sm:$0xff]
    %v741 = vld [vmem:[%s2 + $0x70] sm:$0xff]
    %v742 = vld [vmem:[%s2 + $0x78] sm:$0xff]
    %744 = vset.pattern.permute.xlu0 0
    %745 = vperm.xlu0 %744, %v727
    %v746 = vpop.permute.xlu0 %745
    %749 = vset.pattern.permute.xlu0 0
    %750 = vperm.xlu0 %749, %v728
    %v751 = vpop.permute.xlu0 %750
    %754 = vset.pattern.permute.xlu0 0
    %755 = vperm.xlu0 %754, %v729
    %v756 = vpop.permute.xlu0 %755
    %759 = vset.pattern.permute.xlu0 0
    %760 = vperm.xlu0 %759, %v730
    %v761 = vpop.permute.xlu0 %760
    %764 = vset.pattern.permute.xlu0 0
    %765 = vperm.xlu0 %764, %v731
    %v766 = vpop.permute.xlu0 %765
    %769 = vset.pattern.permute.xlu0 0
    %770 = vperm.xlu0 %769, %v732
    %v771 = vpop.permute.xlu0 %770
    %774 = vset.pattern.permute.xlu0 0
    %775 = vperm.xlu0 %774, %v733
    %v776 = vpop.permute.xlu0 %775
    %779 = vset.pattern.permute.xlu0 0
    %780 = vperm.xlu0 %779, %v734
    %v781 = vpop.permute.xlu0 %780
    %784 = vset.pattern.permute.xlu0 0
    %785 = vperm.xlu0 %784, %v735
    %v786 = vpop.permute.xlu0 %785
    %789 = vset.pattern.permute.xlu0 0
    %790 = vperm.xlu0 %789, %v736
    %v791 = vpop.permute.xlu0 %790
    %794 = vset.pattern.permute.xlu0 0
    %795 = vperm.xlu0 %794, %v737
    %v796 = vpop.permute.xlu0 %795
    %799 = vset.pattern.permute.xlu0 0
    %800 = vperm.xlu0 %799, %v738
    %v801 = vpop.permute.xlu0 %800
    %804 = vset.pattern.permute.xlu0 0
    %805 = vperm.xlu0 %804, %v739
    %v806 = vpop.permute.xlu0 %805
    %809 = vset.pattern.permute.xlu0 0
    %810 = vperm.xlu0 %809, %v740
    %v811 = vpop.permute.xlu0 %810
    %814 = vset.pattern.permute.xlu0 0
    %815 = vperm.xlu0 %814, %v741
    %v816 = vpop.permute.xlu0 %815
    %819 = vset.pattern.permute.xlu0 0
    %820 = vperm.xlu0 %819, %v742
    %v821 = vpop.permute.xlu0 %820
    %v823 = vmul.f32 %v665, %v746
    %v824 = vmul.f32 %v668, %v751
    %v825 = vmul.f32 %v673, %v756
    %v826 = vmul.f32 %v676, %v761
    %v827 = vmul.f32 %v681, %v766
    %v828 = vmul.f32 %v684, %v771
    %v829 = vmul.f32 %v689, %v776
    %v830 = vmul.f32 %v692, %v781
    %v831 = vmul.f32 %v697, %v786
    %v832 = vmul.f32 %v700, %v791
    %v833 = vmul.f32 %v705, %v796
    %v834 = vmul.f32 %v708, %v801
    %v835 = vmul.f32 %v713, %v806
    %v836 = vmul.f32 %v716, %v811
    %v837 = vmul.f32 %v721, %v816
    %v838 = vmul.f32 %v724, %v821
    %v839 = vpack.c.bf16 %v824, %v823
    %v840 = vpack.c.bf16 %v826, %v825
    %v841 = vpack.c.bf16 %v828, %v827
    %v842 = vpack.c.bf16 %v830, %v829
    %v843 = vpack.c.bf16 %v832, %v831
    %v844 = vpack.c.bf16 %v834, %v833
    %v845 = vpack.c.bf16 %v836, %v835
    %v846 = vpack.c.bf16 %v838, %v837
    %v855 = vunpack.c.l.b16 %v839
    %v856 = vunpack.c.h.b16 %v839
    %v857 = vunpack.c.l.b16 %v840
    %v858 = vunpack.c.h.b16 %v840
    %v859 = vunpack.c.l.b16 %v841
    %v860 = vunpack.c.h.b16 %v841
    %v861 = vunpack.c.l.b16 %v842
    %v862 = vunpack.c.h.b16 %v842
    %v863 = vunpack.c.l.b16 %v843
    %v864 = vunpack.c.h.b16 %v843
    %v865 = vunpack.c.l.b16 %v844
    %v866 = vunpack.c.h.b16 %v844
    %v867 = vunpack.c.l.b16 %v845
    %v868 = vunpack.c.h.b16 %v845
    %v869 = vunpack.c.l.b16 %v846
    %v870 = vunpack.c.h.b16 %v846
    %v871 = vpack.c.b16 %v855, %v855
    %v872 = vpack.c.b16 %v856, %v856
    %v873 = vpack.c.b16 %v857, %v857
    %v874 = vpack.c.b16 %v858, %v858
    %v875 = vpack.c.b16 %v859, %v859
    %v876 = vpack.c.b16 %v860, %v860
    %v877 = vpack.c.b16 %v861, %v861
    %v878 = vpack.c.b16 %v862, %v862
    %v879 = vpack.c.b16 %v863, %v863
    %v880 = vpack.c.b16 %v864, %v864
    %v881 = vpack.c.b16 %v865, %v865
    %v882 = vpack.c.b16 %v866, %v866
    %v883 = vpack.c.b16 %v867, %v867
    %v884 = vpack.c.b16 %v868, %v868
    %v885 = vpack.c.b16 %v869, %v869
    %v886 = vpack.c.b16 %v870, %v870
    %903 = vst [vmem:[%s6] sm:$0xf] %v871
    %904 = vst [vmem:[%s6 + $0x4] sm:$0xf] %v872
    %905 = vst [vmem:[%s6 + $0x8] sm:$0xf] %v873
    %906 = vst [vmem:[%s6 + $0xc] sm:$0xf] %v874
    %907 = vst [vmem:[%s6 + $0x10] sm:$0xf] %v875
    %908 = vst [vmem:[%s6 + $0x14] sm:$0xf] %v876
    %909 = vst [vmem:[%s6 + $0x18] sm:$0xf] %v877
    %910 = vst [vmem:[%s6 + $0x1c] sm:$0xf] %v878
    %911 = vst [vmem:[%s6 + $0x20] sm:$0xf] %v879
    %912 = vst [vmem:[%s6 + $0x24] sm:$0xf] %v880
    %913 = vst [vmem:[%s6 + $0x28] sm:$0xf] %v881
    %914 = vst [vmem:[%s6 + $0x2c] sm:$0xf] %v882
    %915 = vst [vmem:[%s6 + $0x30] sm:$0xf] %v883
    %916 = vst [vmem:[%s6 + $0x34] sm:$0xf] %v884
    %917 = vst [vmem:[%s6 + $0x38] sm:$0xf] %v885
    %918 = vst [vmem:[%s6 + $0x3c] sm:$0xf] %v886
  $region29: #{gcn3_forward.5} parent=0 // pred_fallthru
    _
  // Predicated region
  $region30: #{gcn3_forward.5} parent=0 // pred_check
    _
  $region31: #{gcn3_forward.5} parent=0 // pred_check_branch
    %920 = sbr.rel (0) target = $region33
  $region32: #{gcn3_forward.5} parent=0 // pred_region
    _
  $region33: #{gcn3_forward.5} parent=0 // pred_fallthru
    _
  // Predicated region
  $region34: #{gcn3_forward.5} parent=0 // pred_check
    _
  $region35: #{gcn3_forward.5} parent=0 // pred_check_branch
    %922 = sbr.rel (0) target = $region37
  $region36: #{gcn3_forward.5} parent=0 // pred_region
    _
  $region37: #{gcn3_forward.5} parent=0 // pred_fallthru
    _
  // Predicated region
  $region38: #{gcn3_forward.5} parent=0 // pred_check
    _
  $region39: #{gcn3_forward.5} parent=0 // pred_check_branch
    %924 = sbr.rel (0) target = $region41
  $region40: #{gcn3_forward.5} parent=0 // pred_region
    _
  $region41: #{gcn3_forward.5} parent=0 // pred_fallthru
    _
  // Predicated region
  $region42: #{gcn3_forward.5} parent=0 // pred_check
    _
  $region43: #{gcn3_forward.5} parent=0 // pred_check_branch
    %926 = sbr.rel (0) target = $region45
  $region44: #{gcn3_forward.5} parent=0 // pred_region
    _
  $region45: #{gcn3_forward.5} parent=0 // pred_fallthru
    _

// kernel: gcn3_forward.7
$region0: #{gcn3_forward.7}
  #allocation0 [shape = 'u32[]', space=smem, size = 0x4, offset = 0x4, fixed_abs, tag = 'smem constant byte address 0x4 - core index']
  #allocation1 [shape = 'u32[144,128]{1,0:T(1,128)}', space=vmem, size = 0x12000, scoped, tag = 'internal scratch']
  #allocation2 [shape = 'f32[128,128]{1,0:T(8,128)}', space=vmem, size = 0x10000, scoped, tag = 'scratch operand']
  %s0 = inlined_call_operand.vmem [shape: bf16[128,128], index: 0, kind: input, shape index: {}]
  %s1 = inlined_call_operand.vmem [shape: bf16[128,128], index: 1, kind: input, shape index: {}]
  %s2 = inlined_call_operand.vmem [shape: f32[128,1], index: 2, kind: input, shape index: {}]
  %s3 = inlined_call_operand.vmem [shape: f32[1,128], index: 3, kind: input, shape index: {}]
  %s4 = inlined_call_operand.vmem [shape: bf16[128,128], index: 4, kind: input, shape index: {}]
  %s5 = inlined_call_operand.vmem [shape: bf16[128,128], index: 5, kind: input, shape index: {}]
  %s6 = inlined_call_operand.vmem [shape: bf16[384,128], index: 6, kind: input, shape index: {}]
  %s7 = inlined_call_operand.vmem [shape: f32[1,128], index: 7, kind: input, shape index: {}]
  %s8 = inlined_call_operand.vmem [shape: f32[128,128], index: 8, kind: output, shape index: {}]
  %s9 = sld [smem:[#allocation0]]
  $region50: #{gcn3_forward.7} parent=0
    _
  %s11 = ssub.s32 1, %s9
  %s12 = scalar_select 0, %s11, %s9
  // Predicated region
  $region2: #{gcn3_forward.7} parent=0 // pred_check
    _
  $region3: #{gcn3_forward.7} parent=0 // pred_check_branch
    %14 = sbr.rel (0) target = $region5
  $region4: #{gcn3_forward.7} parent=0 // pred_region
    _
  $region5: #{gcn3_forward.7} parent=0 // pred_fallthru
    _
  // Predicated region
  $region6: #{gcn3_forward.7} parent=0 // pred_check
    _
  $region7: #{gcn3_forward.7} parent=0 // pred_check_branch
    %16 = sbr.rel (0) target = $region9
  $region8: #{gcn3_forward.7} parent=0 // pred_region
    _
  $region9: #{gcn3_forward.7} parent=0 // pred_fallthru
    _
  // Predicated region
  $region10: #{gcn3_forward.7} parent=0 // pred_check
    _
  $region11: #{gcn3_forward.7} parent=0 // pred_check_branch
    %18 = sbr.rel (0) target = $region13
  $region12: #{gcn3_forward.7} parent=0 // pred_region
    _
  $region13: #{gcn3_forward.7} parent=0 // pred_fallthru
    _
  // Predicated region
  $region14: #{gcn3_forward.7} parent=0 // pred_check
    _
  $region15: #{gcn3_forward.7} parent=0 // pred_check_branch
    %20 = sbr.rel (0) target = $region17
  $region16: #{gcn3_forward.7} parent=0 // pred_region
    _
  $region17: #{gcn3_forward.7} parent=0 // pred_fallthru
    _
  // Predicated region
  $region18: #{gcn3_forward.7} parent=0 // pred_check
    _
  $region19: #{gcn3_forward.7} parent=0 // pred_check_branch
    %22 = sbr.rel (0) target = $region21
  $region20: #{gcn3_forward.7} parent=0 // pred_region
    _
  $region21: #{gcn3_forward.7} parent=0 // pred_fallthru
    _
  // Predicated region
  $region22: #{gcn3_forward.7} parent=0 // pred_check
    _
  $region23: #{gcn3_forward.7} parent=0 // pred_check_branch
    %24 = sbr.rel (0) target = $region25
  $region24: #{gcn3_forward.7} parent=0 // pred_region
    _
  $region25: #{gcn3_forward.7} parent=0 // pred_fallthru
    _
  // Predicated region
  $region26: #{gcn3_forward.7} parent=0 // pred_check
    _
  $region27: #{gcn3_forward.7} parent=0 // pred_check_branch
    %26 = sbr.rel (0) target = $region29
  $region28: #{gcn3_forward.7} parent=0 // pred_region
    _
  $region29: #{gcn3_forward.7} parent=0 // pred_fallthru
    _
  // Predicated region
  $region30: #{gcn3_forward.7} parent=0 // pred_check
    _
  $region31: #{gcn3_forward.7} parent=0 // pred_check_branch
    %28 = sbr.rel (0) target = $region33
  $region32: #{gcn3_forward.7} parent=0 // pred_region
    _
  $region33: #{gcn3_forward.7} parent=0 // pred_fallthru
    _
  %p30 = scmp.eq.s32.totalorder 0, 0
  // Predicated region
  $region34: #{gcn3_forward.7} parent=0 // pred_check
    %p31 = pneg %p30
  $region35: #{gcn3_forward.7} parent=0 // pred_check_branch
    %33 = sbr.rel (%p31) target = $region37
  $region36: #{gcn3_forward.7} parent=0 // pred_region
    %34 = vst [vmem:[#allocation2] sm:$0xff] 0.0
    %35 = vst [vmem:[#allocation2 + $0x8] sm:$0xff] 0.0
    %36 = vst [vmem:[#allocation2 + $0x10] sm:$0xff] 0.0
    %37 = vst [vmem:[#allocation2 + $0x18] sm:$0xff] 0.0
    %38 = vst [vmem:[#allocation2 + $0x20] sm:$0xff] 0.0
    %39 = vst [vmem:[#allocation2 + $0x28] sm:$0xff] 0.0
    %40 = vst [vmem:[#allocation2 + $0x30] sm:$0xff] 0.0
    %41 = vst [vmem:[#allocation2 + $0x38] sm:$0xff] 0.0
    %42 = vst [vmem:[#allocation2 + $0x40] sm:$0xff] 0.0
    %43 = vst [vmem:[#allocation2 + $0x48] sm:$0xff] 0.0
    %44 = vst [vmem:[#allocation2 + $0x50] sm:$0xff] 0.0
    %45 = vst [vmem:[#allocation2 + $0x58] sm:$0xff] 0.0
    %46 = vst [vmem:[#allocation2 + $0x60] sm:$0xff] 0.0
    %47 = vst [vmem:[#allocation2 + $0x68] sm:$0xff] 0.0
    %48 = vst [vmem:[#allocation2 + $0x70] sm:$0xff] 0.0
    %49 = vst [vmem:[#allocation2 + $0x78] sm:$0xff] 0.0
  $region37: #{gcn3_forward.7} parent=0 // pred_fallthru
    _
  %v50 = vld [vmem:[#allocation2] sm:$0xff]
  %v51 = vld [vmem:[#allocation2 + $0x8] sm:$0xff]
  %v52 = vld [vmem:[#allocation2 + $0x10] sm:$0xff]
  %v53 = vld [vmem:[#allocation2 + $0x18] sm:$0xff]
  %v54 = vld [vmem:[#allocation2 + $0x20] sm:$0xff]
  %v55 = vld [vmem:[#allocation2 + $0x28] sm:$0xff]
  %v56 = vld [vmem:[#allocation2 + $0x30] sm:$0xff]
  %v57 = vld [vmem:[#allocation2 + $0x38] sm:$0xff]
  %v58 = vld [vmem:[#allocation2 + $0x40] sm:$0xff]
  %v59 = vld [vmem:[#allocation2 + $0x48] sm:$0xff]
  %v60 = vld [vmem:[#allocation2 + $0x50] sm:$0xff]
  %v61 = vld [vmem:[#allocation2 + $0x58] sm:$0xff]
  %v62 = vld [vmem:[#allocation2 + $0x60] sm:$0xff]
  %v63 = vld [vmem:[#allocation2 + $0x68] sm:$0xff]
  %v64 = vld [vmem:[#allocation2 + $0x70] sm:$0xff]
  %v65 = vld [vmem:[#allocation2 + $0x78] sm:$0xff]
  %v66 = vld [vmem:[%s0] sm:$0xf]
  %v67 = vld [vmem:[%s0 + $0x4] sm:$0xf]
  %v68 = vld [vmem:[%s0 + $0x8] sm:$0xf]
  %v69 = vld [vmem:[%s0 + $0xc] sm:$0xf]
  %v70 = vld [vmem:[%s0 + $0x10] sm:$0xf]
  %v71 = vld [vmem:[%s0 + $0x14] sm:$0xf]
  %v72 = vld [vmem:[%s0 + $0x18] sm:$0xf]
  %v73 = vld [vmem:[%s0 + $0x1c] sm:$0xf]
  %v74 = vld [vmem:[%s0 + $0x20] sm:$0xf]
  %v75 = vld [vmem:[%s0 + $0x24] sm:$0xf]
  %v76 = vld [vmem:[%s0 + $0x28] sm:$0xf]
  %v77 = vld [vmem:[%s0 + $0x2c] sm:$0xf]
  %v78 = vld [vmem:[%s0 + $0x30] sm:$0xf]
  %v79 = vld [vmem:[%s0 + $0x34] sm:$0xf]
  %v80 = vld [vmem:[%s0 + $0x38] sm:$0xf]
  %v81 = vld [vmem:[%s0 + $0x3c] sm:$0xf]
  %v82 = vld [vmem:[%s1] sm:$0xf]
  %v83 = vld [vmem:[%s1 + $0x4] sm:$0xf]
  %v84 = vld [vmem:[%s1 + $0x8] sm:$0xf]
  %v85 = vld [vmem:[%s1 + $0xc] sm:$0xf]
  %v86 = vld [vmem:[%s1 + $0x10] sm:$0xf]
  %v87 = vld [vmem:[%s1 + $0x14] sm:$0xf]
  %v88 = vld [vmem:[%s1 + $0x18] sm:$0xf]
  %v89 = vld [vmem:[%s1 + $0x1c] sm:$0xf]
  %v90 = vld [vmem:[%s1 + $0x20] sm:$0xf]
  %v91 = vld [vmem:[%s1 + $0x24] sm:$0xf]
  %v92 = vld [vmem:[%s1 + $0x28] sm:$0xf]
  %v93 = vld [vmem:[%s1 + $0x2c] sm:$0xf]
  %v94 = vld [vmem:[%s1 + $0x30] sm:$0xf]
  %v95 = vld [vmem:[%s1 + $0x34] sm:$0xf]
  %v96 = vld [vmem:[%s1 + $0x38] sm:$0xf]
  %v97 = vld [vmem:[%s1 + $0x3c] sm:$0xf]
  %v114 = vunpack.c.l.b16 %v66
  %v115 = vunpack.c.l.b16 %v67
  %v116 = vunpack.c.l.b16 %v68
  %v117 = vunpack.c.l.b16 %v69
  %v118 = vunpack.c.l.b16 %v70
  %v119 = vunpack.c.l.b16 %v71
  %v120 = vunpack.c.l.b16 %v72
  %v121 = vunpack.c.l.b16 %v73
  %v122 = vunpack.c.l.b16 %v74
  %v123 = vunpack.c.l.b16 %v75
  %v124 = vunpack.c.l.b16 %v76
  %v125 = vunpack.c.l.b16 %v77
  %v126 = vunpack.c.l.b16 %v78
  %v127 = vunpack.c.l.b16 %v79
  %v128 = vunpack.c.l.b16 %v80
  %v129 = vunpack.c.l.b16 %v81
  %v130 = vpack.c.b16 %v115, %v114
  %v131 = vpack.c.b16 %v117, %v116
  %v132 = vpack.c.b16 %v119, %v118
  %v133 = vpack.c.b16 %v121, %v120
  %v134 = vpack.c.b16 %v123, %v122
  %v135 = vpack.c.b16 %v125, %v124
  %v136 = vpack.c.b16 %v127, %v126
  %v137 = vpack.c.b16 %v129, %v128
  %v162 = vunpack.c.l.b16 %v82
  %v163 = vunpack.c.l.b16 %v83
  %v164 = vunpack.c.l.b16 %v84
  %v165 = vunpack.c.l.b16 %v85
  %v166 = vunpack.c.l.b16 %v86
  %v167 = vunpack.c.l.b16 %v87
  %v168 = vunpack.c.l.b16 %v88
  %v169 = vunpack.c.l.b16 %v89
  %v170 = vunpack.c.l.b16 %v90
  %v171 = vunpack.c.l.b16 %v91
  %v172 = vunpack.c.l.b16 %v92
  %v173 = vunpack.c.l.b16 %v93
  %v174 = vunpack.c.l.b16 %v94
  %v175 = vunpack.c.l.b16 %v95
  %v176 = vunpack.c.l.b16 %v96
  %v177 = vunpack.c.l.b16 %v97
  %v178 = vpack.c.b16 %v163, %v162
  %v179 = vpack.c.b16 %v165, %v164
  %v180 = vpack.c.b16 %v167, %v166
  %v181 = vpack.c.b16 %v169, %v168
  %v182 = vpack.c.b16 %v171, %v170
  %v183 = vpack.c.b16 %v173, %v172
  %v184 = vpack.c.b16 %v175, %v174
  %v185 = vpack.c.b16 %v177, %v176
  %194 = vmatprep.subr.bf16.mxu0 0
  %195 = vmatpush1.bf16.msra.mxu0 %v178
  %196 = vmatprep.subr.bf16.mxu0 0
  %197 = vmatpush1.bf16.msra.mxu0 %v179
  %198 = vmatprep.subr.bf16.mxu0 0
  %199 = vmatpush1.bf16.msra.mxu0 %v180
  %200 = vmatprep.subr.bf16.mxu0 0
  %201 = vmatpush1.bf16.msra.mxu0 %v181
  %202 = vmatprep.subr.bf16.mxu0 0
  %203 = vmatpush1.bf16.msra.mxu0 %v182
  %204 = vmatprep.subr.bf16.mxu0 0
  %205 = vmatpush1.bf16.msra.mxu0 %v183
  %206 = vmatprep.subr.bf16.mxu0 0
  %207 = vmatpush1.bf16.msra.mxu0 %v184
  %208 = vmatprep.subr.bf16.mxu0 0
  %209 = vmatpush1.bf16.msra.mxu0 %v185
  %210 = vmatprep.subr.bf16.mxu0 0
  %211 = vmatpush1.bf16.msra.mxu0 0
  %212 = vmatprep.subr.bf16.mxu0 0
  %213 = vmatpush1.bf16.msra.mxu0 0
  %214 = vmatprep.subr.bf16.mxu0 0
  %215 = vmatpush1.bf16.msra.mxu0 0
  %216 = vmatprep.subr.bf16.mxu0 0
  %217 = vmatpush1.bf16.msra.mxu0 0
  %218 = vmatprep.subr.bf16.mxu0 0
  %219 = vmatpush1.bf16.msra.mxu0 0
  %220 = vmatprep.subr.bf16.mxu0 0
  %221 = vmatpush1.bf16.msra.mxu0 0
  %222 = vmatprep.subr.bf16.mxu0 0
  %223 = vmatpush1.bf16.msra.mxu0 0
  %224 = vmatprep.subr.bf16.mxu0 0
  %225 = vmatpush1.bf16.msra.mxu0 0
  %226 = vmatprep.mubr.bf16.mxu0 0
  %227 = vmatmul.mubr.bf16.gmra.mrb[0].mxu0 %v130
  %v228 = vpop.f32.mrb[0].mxu0
  %v229 = vadd.f32 0.0, %v228
  %v230 = vpop.f32.mrb[0].mxu0
  %v231 = vpop.f32.mrb[0].mxu0
  %v232 = vadd.f32 0.0, %v231
  %v233 = vpop.f32.mrb[0].mxu0
  %234 = vmatprep.mubr.bf16.mxu0 0
  %235 = vmatmul.mubr.bf16.gmra.mrb[0].mxu0 %v131
  %v236 = vpop.f32.mrb[0].mxu0
  %v237 = vadd.f32 0.0, %v236
  %v238 = vpop.f32.mrb[0].mxu0
  %v239 = vpop.f32.mrb[0].mxu0
  %v240 = vadd.f32 0.0, %v239
  %v241 = vpop.f32.mrb[0].mxu0
  %242 = vmatprep.mubr.bf16.mxu0 0
  %243 = vmatmul.mubr.bf16.gmra.mrb[0].mxu0 %v132
  %v244 = vpop.f32.mrb[0].mxu0
  %v245 = vadd.f32 0.0, %v244
  %v246 = vpop.f32.mrb[0].mxu0
  %v247 = vpop.f32.mrb[0].mxu0
  %v248 = vadd.f32 0.0, %v247
  %v249 = vpop.f32.mrb[0].mxu0
  %250 = vmatprep.mubr.bf16.mxu0 0
  %251 = vmatmul.mubr.bf16.gmra.mrb[0].mxu0 %v133
  %v252 = vpop.f32.mrb[0].mxu0
  %v253 = vadd.f32 0.0, %v252
  %v254 = vpop.f32.mrb[0].mxu0
  %v255 = vpop.f32.mrb[0].mxu0
  %v256 = vadd.f32 0.0, %v255
  %v257 = vpop.f32.mrb[0].mxu0
  %258 = vmatprep.mubr.bf16.mxu0 0
  %259 = vmatmul.mubr.bf16.gmra.mrb[0].mxu0 %v134
  %v260 = vpop.f32.mrb[0].mxu0
  %v261 = vadd.f32 0.0, %v260
  %v262 = vpop.f32.mrb[0].mxu0
  %v263 = vpop.f32.mrb[0].mxu0
  %v264 = vadd.f32 0.0, %v263
  %v265 = vpop.f32.mrb[0].mxu0
  %266 = vmatprep.mubr.bf16.mxu0 0
  %267 = vmatmul.mubr.bf16.gmra.mrb[0].mxu0 %v135
  %v268 = vpop.f32.mrb[0].mxu0
  %v269 = vadd.f32 0.0, %v268
  %v270 = vpop.f32.mrb[0].mxu0
  %v271 = vpop.f32.mrb[0].mxu0
  %v272 = vadd.f32 0.0, %v271
  %v273 = vpop.f32.mrb[0].mxu0
  %274 = vmatprep.mubr.bf16.mxu0 0
  %275 = vmatmul.mubr.bf16.gmra.mrb[0].mxu0 %v136
  %v276 = vpop.f32.mrb[0].mxu0
  %v277 = vadd.f32 0.0, %v276
  %v278 = vpop.f32.mrb[0].mxu0
  %v279 = vpop.f32.mrb[0].mxu0
  %v280 = vadd.f32 0.0, %v279
  %v281 = vpop.f32.mrb[0].mxu0
  %282 = vmatprep.mubr.bf16.mxu0 0
  %283 = vmatmul.mubr.bf16.gmra.mrb[0].mxu0 %v137
  %v284 = vpop.f32.mrb[0].mxu0
  %v285 = vadd.f32 0.0, %v284
  %v286 = vpop.f32.mrb[0].mxu0
  %v287 = vpop.f32.mrb[0].mxu0
  %v288 = vadd.f32 0.0, %v287
  %v289 = vpop.f32.mrb[0].mxu0
  %290 = vdwg.mxu0
  %v291 = vadd.f32 %v50, %v229
  %v292 = vadd.f32 %v51, %v232
  %v293 = vadd.f32 %v52, %v237
  %v294 = vadd.f32 %v53, %v240
  %v295 = vadd.f32 %v54, %v245
  %v296 = vadd.f32 %v55, %v248
  %v297 = vadd.f32 %v56, %v253
  %v298 = vadd.f32 %v57, %v256
  %v299 = vadd.f32 %v58, %v261
  %v300 = vadd.f32 %v59, %v264
  %v301 = vadd.f32 %v60, %v269
  %v302 = vadd.f32 %v61, %v272
  %v303 = vadd.f32 %v62, %v277
  %v304 = vadd.f32 %v63, %v280
  %v305 = vadd.f32 %v64, %v285
  %v306 = vadd.f32 %v65, %v288
  %307 = vst [vmem:[#allocation2] sm:$0xff] %v291
  %308 = vst [vmem:[#allocation2 + $0x8] sm:$0xff] %v292
  %309 = vst [vmem:[#allocation2 + $0x10] sm:$0xff] %v293
  %310 = vst [vmem:[#allocation2 + $0x18] sm:$0xff] %v294
  %311 = vst [vmem:[#allocation2 + $0x20] sm:$0xff] %v295
  %312 = vst [vmem:[#allocation2 + $0x28] sm:$0xff] %v296
  %313 = vst [vmem:[#allocation2 + $0x30] sm:$0xff] %v297
  %314 = vst [vmem:[#allocation2 + $0x38] sm:$0xff] %v298
  %315 = vst [vmem:[#allocation2 + $0x40] sm:$0xff] %v299
  %316 = vst [vmem:[#allocation2 + $0x48] sm:$0xff] %v300
  %317 = vst [vmem:[#allocation2 + $0x50] sm:$0xff] %v301
  %318 = vst [vmem:[#allocation2 + $0x58] sm:$0xff] %v302
  %319 = vst [vmem:[#allocation2 + $0x60] sm:$0xff] %v303
  %320 = vst [vmem:[#allocation2 + $0x68] sm:$0xff] %v304
  %321 = vst [vmem:[#allocation2 + $0x70] sm:$0xff] %v305
  %322 = vst [vmem:[#allocation2 + $0x78] sm:$0xff] %v306
  // Predicated region
  $region38: #{gcn3_forward.7} parent=0 // pred_check
    %p323 = pneg %p30
  $region39: #{gcn3_forward.7} parent=0 // pred_check_branch
    %325 = sbr.rel (%p323) target = $region41
  $region40: #{gcn3_forward.7} parent=0 // pred_region
    %v326 = vld [vmem:[#allocation2] sm:$0xff]
    %v327 = vld [vmem:[#allocation2 + $0x8] sm:$0xff]
    %v328 = vld [vmem:[#allocation2 + $0x10] sm:$0xff]
    %v329 = vld [vmem:[#allocation2 + $0x18] sm:$0xff]
    %v330 = vld [vmem:[#allocation2 + $0x20] sm:$0xff]
    %v331 = vld [vmem:[#allocation2 + $0x28] sm:$0xff]
    %v332 = vld [vmem:[#allocation2 + $0x30] sm:$0xff]
    %v333 = vld [vmem:[#allocation2 + $0x38] sm:$0xff]
    %v334 = vld [vmem:[#allocation2 + $0x40] sm:$0xff]
    %v335 = vld [vmem:[#allocation2 + $0x48] sm:$0xff]
    %v336 = vld [vmem:[#allocation2 + $0x50] sm:$0xff]
    %v337 = vld [vmem:[#allocation2 + $0x58] sm:$0xff]
    %v338 = vld [vmem:[#allocation2 + $0x60] sm:$0xff]
    %v339 = vld [vmem:[#allocation2 + $0x68] sm:$0xff]
    %v340 = vld [vmem:[#allocation2 + $0x70] sm:$0xff]
    %v341 = vld [vmem:[#allocation2 + $0x78] sm:$0xff]
    %v342 = vld [vmem:[%s2] sm:$0xff]
    %v343 = vld [vmem:[%s2 + $0x8] sm:$0xff]
    %v344 = vld [vmem:[%s2 + $0x10] sm:$0xff]
    %v345 = vld [vmem:[%s2 + $0x18] sm:$0xff]
    %v346 = vld [vmem:[%s2 + $0x20] sm:$0xff]
    %v347 = vld [vmem:[%s2 + $0x28] sm:$0xff]
    %v348 = vld [vmem:[%s2 + $0x30] sm:$0xff]
    %v349 = vld [vmem:[%s2 + $0x38] sm:$0xff]
    %v350 = vld [vmem:[%s2 + $0x40] sm:$0xff]
    %v351 = vld [vmem:[%s2 + $0x48] sm:$0xff]
    %v352 = vld [vmem:[%s2 + $0x50] sm:$0xff]
    %v353 = vld [vmem:[%s2 + $0x58] sm:$0xff]
    %v354 = vld [vmem:[%s2 + $0x60] sm:$0xff]
    %v355 = vld [vmem:[%s2 + $0x68] sm:$0xff]
    %v356 = vld [vmem:[%s2 + $0x70] sm:$0xff]
    %v357 = vld [vmem:[%s2 + $0x78] sm:$0xff]
    %359 = vset.pattern.permute.xlu0 0
    %360 = vperm.xlu0 %359, %v342
    %v361 = vpop.permute.xlu0 %360
    %364 = vset.pattern.permute.xlu0 0
    %365 = vperm.xlu0 %364, %v343
    %v366 = vpop.permute.xlu0 %365
    %369 = vset.pattern.permute.xlu0 0
    %370 = vperm.xlu0 %369, %v344
    %v371 = vpop.permute.xlu0 %370
    %374 = vset.pattern.permute.xlu0 0
    %375 = vperm.xlu0 %374, %v345
    %v376 = vpop.permute.xlu0 %375
    %379 = vset.pattern.permute.xlu0 0
    %380 = vperm.xlu0 %379, %v346
    %v381 = vpop.permute.xlu0 %380
    %384 = vset.pattern.permute.xlu0 0
    %385 = vperm.xlu0 %384, %v347
    %v386 = vpop.permute.xlu0 %385
    %389 = vset.pattern.permute.xlu0 0
    %390 = vperm.xlu0 %389, %v348
    %v391 = vpop.permute.xlu0 %390
    %394 = vset.pattern.permute.xlu0 0
    %395 = vperm.xlu0 %394, %v349
    %v396 = vpop.permute.xlu0 %395
    %399 = vset.pattern.permute.xlu0 0
    %400 = vperm.xlu0 %399, %v350
    %v401 = vpop.permute.xlu0 %400
    %404 = vset.pattern.permute.xlu0 0
    %405 = vperm.xlu0 %404, %v351
    %v406 = vpop.permute.xlu0 %405
    %409 = vset.pattern.permute.xlu0 0
    %410 = vperm.xlu0 %409, %v352
    %v411 = vpop.permute.xlu0 %410
    %414 = vset.pattern.permute.xlu0 0
    %415 = vperm.xlu0 %414, %v353
    %v416 = vpop.permute.xlu0 %415
    %419 = vset.pattern.permute.xlu0 0
    %420 = vperm.xlu0 %419, %v354
    %v421 = vpop.permute.xlu0 %420
    %424 = vset.pattern.permute.xlu0 0
    %425 = vperm.xlu0 %424, %v355
    %v426 = vpop.permute.xlu0 %425
    %429 = vset.pattern.permute.xlu0 0
    %430 = vperm.xlu0 %429, %v356
    %v431 = vpop.permute.xlu0 %430
    %434 = vset.pattern.permute.xlu0 0
    %435 = vperm.xlu0 %434, %v357
    %v436 = vpop.permute.xlu0 %435
    %v438 = vmul.f32 %v326, %v361
    %v439 = vmul.f32 %v327, %v366
    %v440 = vmul.f32 %v328, %v371
    %v441 = vmul.f32 %v329, %v376
    %v442 = vmul.f32 %v330, %v381
    %v443 = vmul.f32 %v331, %v386
    %v444 = vmul.f32 %v332, %v391
    %v445 = vmul.f32 %v333, %v396
    %v446 = vmul.f32 %v334, %v401
    %v447 = vmul.f32 %v335, %v406
    %v448 = vmul.f32 %v336, %v411
    %v449 = vmul.f32 %v337, %v416
    %v450 = vmul.f32 %v338, %v421
    %v451 = vmul.f32 %v339, %v426
    %v452 = vmul.f32 %v340, %v431
    %v453 = vmul.f32 %v341, %v436
    %v454 = vld [vmem:[%s3] sm:$0x1]
    %v456 = vlaneseq
    %v457 = vshrl.u32 %v456, 7
    %v458 = vsub.s32 0, %v457
    %v459 = vrot.slane %v454, %v458
    %v461 = vadd.f32 %v438, %v459
    %v462 = vadd.f32 %v439, %v459
    %v463 = vadd.f32 %v440, %v459
    %v464 = vadd.f32 %v441, %v459
    %v465 = vadd.f32 %v442, %v459
    %v466 = vadd.f32 %v443, %v459
    %v467 = vadd.f32 %v444, %v459
    %v468 = vadd.f32 %v445, %v459
    %v469 = vadd.f32 %v446, %v459
    %v470 = vadd.f32 %v447, %v459
    %v471 = vadd.f32 %v448, %v459
    %v472 = vadd.f32 %v449, %v459
    %v473 = vadd.f32 %v450, %v459
    %v474 = vadd.f32 %v451, %v459
    %v475 = vadd.f32 %v452, %v459
    %v476 = vadd.f32 %v453, %v459
    %v477 = vmax.f32 %v461, 0.0
    %v478 = vmax.f32 %v462, 0.0
    %v479 = vmax.f32 %v463, 0.0
    %v480 = vmax.f32 %v464, 0.0
    %v481 = vmax.f32 %v465, 0.0
    %v482 = vmax.f32 %v466, 0.0
    %v483 = vmax.f32 %v467, 0.0
    %v484 = vmax.f32 %v468, 0.0
    %v485 = vmax.f32 %v469, 0.0
    %v486 = vmax.f32 %v470, 0.0
    %v487 = vmax.f32 %v471, 0.0
    %v488 = vmax.f32 %v472, 0.0
    %v489 = vmax.f32 %v473, 0.0
    %v490 = vmax.f32 %v474, 0.0
    %v491 = vmax.f32 %v475, 0.0
    %v492 = vmax.f32 %v476, 0.0
    %v493 = vpack.c.bf16 %v478, %v477
    %v494 = vpack.c.bf16 %v480, %v479
    %v495 = vpack.c.bf16 %v482, %v481
    %v496 = vpack.c.bf16 %v484, %v483
    %v497 = vpack.c.bf16 %v486, %v485
    %v498 = vpack.c.bf16 %v488, %v487
    %v499 = vpack.c.bf16 %v490, %v489
    %v500 = vpack.c.bf16 %v492, %v491
    %v501 = vld [vmem:[%s4] sm:$0xf]
    %v502 = vld [vmem:[%s4 + $0x4] sm:$0xf]
    %v503 = vld [vmem:[%s4 + $0x8] sm:$0xf]
    %v504 = vld [vmem:[%s4 + $0xc] sm:$0xf]
    %v505 = vld [vmem:[%s4 + $0x10] sm:$0xf]
    %v506 = vld [vmem:[%s4 + $0x14] sm:$0xf]
    %v507 = vld [vmem:[%s4 + $0x18] sm:$0xf]
    %v508 = vld [vmem:[%s4 + $0x1c] sm:$0xf]
    %v509 = vld [vmem:[%s4 + $0x20] sm:$0xf]
    %v510 = vld [vmem:[%s4 + $0x24] sm:$0xf]
    %v511 = vld [vmem:[%s4 + $0x28] sm:$0xf]
    %v512 = vld [vmem:[%s4 + $0x2c] sm:$0xf]
    %v513 = vld [vmem:[%s4 + $0x30] sm:$0xf]
    %v514 = vld [vmem:[%s4 + $0x34] sm:$0xf]
    %v515 = vld [vmem:[%s4 + $0x38] sm:$0xf]
    %v516 = vld [vmem:[%s4 + $0x3c] sm:$0xf]
    %v517 = vld [vmem:[%s6] sm:$0xf]
    %v518 = vld [vmem:[%s6 + $0x4] sm:$0xf]
    %v519 = vld [vmem:[%s6 + $0x8] sm:$0xf]
    %v520 = vld [vmem:[%s6 + $0xc] sm:$0xf]
    %v521 = vld [vmem:[%s6 + $0x10] sm:$0xf]
    %v522 = vld [vmem:[%s6 + $0x14] sm:$0xf]
    %v523 = vld [vmem:[%s6 + $0x18] sm:$0xf]
    %v524 = vld [vmem:[%s6 + $0x1c] sm:$0xf]
    %v525 = vld [vmem:[%s6 + $0x20] sm:$0xf]
    %v526 = vld [vmem:[%s6 + $0x24] sm:$0xf]
    %v527 = vld [vmem:[%s6 + $0x28] sm:$0xf]
    %v528 = vld [vmem:[%s6 + $0x2c] sm:$0xf]
    %v529 = vld [vmem:[%s6 + $0x30] sm:$0xf]
    %v530 = vld [vmem:[%s6 + $0x34] sm:$0xf]
    %v531 = vld [vmem:[%s6 + $0x38] sm:$0xf]
    %v532 = vld [vmem:[%s6 + $0x3c] sm:$0xf]
    %v533 = vld [vmem:[%s5] sm:$0xf]
    %v534 = vld [vmem:[%s5 + $0x4] sm:$0xf]
    %v535 = vld [vmem:[%s5 + $0x8] sm:$0xf]
    %v536 = vld [vmem:[%s5 + $0xc] sm:$0xf]
    %v537 = vld [vmem:[%s5 + $0x10] sm:$0xf]
    %v538 = vld [vmem:[%s5 + $0x14] sm:$0xf]
    %v539 = vld [vmem:[%s5 + $0x18] sm:$0xf]
    %v540 = vld [vmem:[%s5 + $0x1c] sm:$0xf]
    %v541 = vld [vmem:[%s5 + $0x20] sm:$0xf]
    %v542 = vld [vmem:[%s5 + $0x24] sm:$0xf]
    %v543 = vld [vmem:[%s5 + $0x28] sm:$0xf]
    %v544 = vld [vmem:[%s5 + $0x2c] sm:$0xf]
    %v545 = vld [vmem:[%s5 + $0x30] sm:$0xf]
    %v546 = vld [vmem:[%s5 + $0x34] sm:$0xf]
    %v547 = vld [vmem:[%s5 + $0x38] sm:$0xf]
    %v548 = vld [vmem:[%s5 + $0x3c] sm:$0xf]
    %v549 = vld [vmem:[%s6 + $0x40] sm:$0xf]
    %v550 = vld [vmem:[%s6 + $0x44] sm:$0xf]
    %v551 = vld [vmem:[%s6 + $0x48] sm:$0xf]
    %v552 = vld [vmem:[%s6 + $0x4c] sm:$0xf]
    %v553 = vld [vmem:[%s6 + $0x50] sm:$0xf]
    %v554 = vld [vmem:[%s6 + $0x54] sm:$0xf]
    %v555 = vld [vmem:[%s6 + $0x58] sm:$0xf]
    %v556 = vld [vmem:[%s6 + $0x5c] sm:$0xf]
    %v557 = vld [vmem:[%s6 + $0x60] sm:$0xf]
    %v558 = vld [vmem:[%s6 + $0x64] sm:$0xf]
    %v559 = vld [vmem:[%s6 + $0x68] sm:$0xf]
    %v560 = vld [vmem:[%s6 + $0x6c] sm:$0xf]
    %v561 = vld [vmem:[%s6 + $0x70] sm:$0xf]
    %v562 = vld [vmem:[%s6 + $0x74] sm:$0xf]
    %v563 = vld [vmem:[%s6 + $0x78] sm:$0xf]
    %v564 = vld [vmem:[%s6 + $0x7c] sm:$0xf]
    %v581 = vunpack.c.l.b16 %v533
    %v582 = vunpack.c.l.b16 %v534
    %v583 = vunpack.c.l.b16 %v535
    %v584 = vunpack.c.l.b16 %v536
    %v585 = vunpack.c.l.b16 %v537
    %v586 = vunpack.c.l.b16 %v538
    %v587 = vunpack.c.l.b16 %v539
    %v588 = vunpack.c.l.b16 %v540
    %v589 = vunpack.c.l.b16 %v541
    %v590 = vunpack.c.l.b16 %v542
    %v591 = vunpack.c.l.b16 %v543
    %v592 = vunpack.c.l.b16 %v544
    %v593 = vunpack.c.l.b16 %v545
    %v594 = vunpack.c.l.b16 %v546
    %v595 = vunpack.c.l.b16 %v547
    %v596 = vunpack.c.l.b16 %v548
    %v597 = vpack.c.b16 %v582, %v581
    %v598 = vpack.c.b16 %v584, %v583
    %v599 = vpack.c.b16 %v586, %v585
    %v600 = vpack.c.b16 %v588, %v587
    %v601 = vpack.c.b16 %v590, %v589
    %v602 = vpack.c.b16 %v592, %v591
    %v603 = vpack.c.b16 %v594, %v593
    %v604 = vpack.c.b16 %v596, %v595
    %v629 = vunpack.c.l.b16 %v549
    %v630 = vunpack.c.l.b16 %v550
    %v631 = vunpack.c.l.b16 %v551
    %v632 = vunpack.c.l.b16 %v552
    %v633 = vunpack.c.l.b16 %v553
    %v634 = vunpack.c.l.b16 %v554
    %v635 = vunpack.c.l.b16 %v555
    %v636 = vunpack.c.l.b16 %v556
    %v637 = vunpack.c.l.b16 %v557
    %v638 = vunpack.c.l.b16 %v558
    %v639 = vunpack.c.l.b16 %v559
    %v640 = vunpack.c.l.b16 %v560
    %v641 = vunpack.c.l.b16 %v561
    %v642 = vunpack.c.l.b16 %v562
    %v643 = vunpack.c.l.b16 %v563
    %v644 = vunpack.c.l.b16 %v564
    %v645 = vpack.c.b16 %v630, %v629
    %v646 = vpack.c.b16 %v632, %v631
    %v647 = vpack.c.b16 %v634, %v633
    %v648 = vpack.c.b16 %v636, %v635
    %v649 = vpack.c.b16 %v638, %v637
    %v650 = vpack.c.b16 %v640, %v639
    %v651 = vpack.c.b16 %v642, %v641
    %v652 = vpack.c.b16 %v644, %v643
    %661 = vmatprep.subr.bf16.mxu0 0
    %662 = vmatpush1.bf16.msra.mxu0 %v645
    %663 = vmatprep.subr.bf16.mxu0 0
    %664 = vmatpush1.bf16.msra.mxu0 %v646
    %665 = vmatprep.subr.bf16.mxu0 0
    %666 = vmatpush1.bf16.msra.mxu0 %v647
    %667 = vmatprep.subr.bf16.mxu0 0
    %668 = vmatpush1.bf16.msra.mxu0 %v648
    %669 = vmatprep.subr.bf16.mxu0 0
    %670 = vmatpush1.bf16.msra.mxu0 %v649
    %671 = vmatprep.subr.bf16.mxu0 0
    %672 = vmatpush1.bf16.msra.mxu0 %v650
    %673 = vmatprep.subr.bf16.mxu0 0
    %674 = vmatpush1.bf16.msra.mxu0 %v651
    %675 = vmatprep.subr.bf16.mxu0 0
    %676 = vmatpush1.bf16.msra.mxu0 %v652
    %677 = vmatprep.subr.bf16.mxu0 0
    %678 = vmatpush1.bf16.msra.mxu0 0
    %679 = vmatprep.subr.bf16.mxu0 0
    %680 = vmatpush1.bf16.msra.mxu0 0
    %681 = vmatprep.subr.bf16.mxu0 0
    %682 = vmatpush1.bf16.msra.mxu0 0
    %683 = vmatprep.subr.bf16.mxu0 0
    %684 = vmatpush1.bf16.msra.mxu0 0
    %685 = vmatprep.subr.bf16.mxu0 0
    %686 = vmatpush1.bf16.msra.mxu0 0
    %687 = vmatprep.subr.bf16.mxu0 0
    %688 = vmatpush1.bf16.msra.mxu0 0
    %689 = vmatprep.subr.bf16.mxu0 0
    %690 = vmatpush1.bf16.msra.mxu0 0
    %691 = vmatprep.subr.bf16.mxu0 0
    %692 = vmatpush1.bf16.msra.mxu0 0
    %693 = vmatprep.mubr.bf16.mxu0 0
    %694 = vmatmul.mubr.bf16.gmra.mrb[0].mxu0 %v597
    %v695 = vpop.f32.mrb[0].mxu0
    %v696 = vadd.f32 0.0, %v695
    %v697 = vpop.f32.mrb[0].mxu0
    %v698 = vpop.f32.mrb[0].mxu0
    %v699 = vadd.f32 0.0, %v698
    %v700 = vpop.f32.mrb[0].mxu0
    %701 = vmatprep.mubr.bf16.mxu0 0
    %702 = vmatmul.mubr.bf16.gmra.mrb[0].mxu0 %v598
    %v703 = vpop.f32.mrb[0].mxu0
    %v704 = vadd.f32 0.0, %v703
    %v705 = vpop.f32.mrb[0].mxu0
    %v706 = vpop.f32.mrb[0].mxu0
    %v707 = vadd.f32 0.0, %v706
    %v708 = vpop.f32.mrb[0].mxu0
    %709 = vmatprep.mubr.bf16.mxu0 0
    %710 = vmatmul.mubr.bf16.gmra.mrb[0].mxu0 %v599
    %v711 = vpop.f32.mrb[0].mxu0
    %v712 = vadd.f32 0.0, %v711
    %v713 = vpop.f32.mrb[0].mxu0
    %v714 = vpop.f32.mrb[0].mxu0
    %v715 = vadd.f32 0.0, %v714
    %v716 = vpop.f32.mrb[0].mxu0
    %717 = vmatprep.mubr.bf16.mxu0 0
    %718 = vmatmul.mubr.bf16.gmra.mrb[0].mxu0 %v600
    %v719 = vpop.f32.mrb[0].mxu0
    %v720 = vadd.f32 0.0, %v719
    %v721 = vpop.f32.mrb[0].mxu0
    %v722 = vpop.f32.mrb[0].mxu0
    %v723 = vadd.f32 0.0, %v722
    %v724 = vpop.f32.mrb[0].mxu0
    %725 = vmatprep.mubr.bf16.mxu0 0
    %726 = vmatmul.mubr.bf16.gmra.mrb[0].mxu0 %v601
    %v727 = vpop.f32.mrb[0].mxu0
    %v728 = vadd.f32 0.0, %v727
    %v729 = vpop.f32.mrb[0].mxu0
    %v730 = vpop.f32.mrb[0].mxu0
    %v731 = vadd.f32 0.0, %v730
    %v732 = vpop.f32.mrb[0].mxu0
    %733 = vmatprep.mubr.bf16.mxu0 0
    %734 = vmatmul.mubr.bf16.gmra.mrb[0].mxu0 %v602
    %v735 = vpop.f32.mrb[0].mxu0
    %v736 = vadd.f32 0.0, %v735
    %v737 = vpop.f32.mrb[0].mxu0
    %v738 = vpop.f32.mrb[0].mxu0
    %v739 = vadd.f32 0.0, %v738
    %v740 = vpop.f32.mrb[0].mxu0
    %741 = vmatprep.mubr.bf16.mxu0 0
    %742 = vmatmul.mubr.bf16.gmra.mrb[0].mxu0 %v603
    %v743 = vpop.f32.mrb[0].mxu0
    %v744 = vadd.f32 0.0, %v743
    %v745 = vpop.f32.mrb[0].mxu0
    %v746 = vpop.f32.mrb[0].mxu0
    %v747 = vadd.f32 0.0, %v746
    %v748 = vpop.f32.mrb[0].mxu0
    %749 = vmatprep.mubr.bf16.mxu0 0
    %750 = vmatmul.mubr.bf16.gmra.mrb[0].mxu0 %v604
    %v751 = vpop.f32.mrb[0].mxu0
    %v752 = vadd.f32 0.0, %v751
    %v753 = vpop.f32.mrb[0].mxu0
    %v754 = vpop.f32.mrb[0].mxu0
    %v755 = vadd.f32 0.0, %v754
    %v756 = vpop.f32.mrb[0].mxu0
    %757 = vdwg.mxu0
    %v774 = vunpack.c.l.b16 %v501
    %v775 = vunpack.c.l.b16 %v502
    %v776 = vunpack.c.l.b16 %v503
    %v777 = vunpack.c.l.b16 %v504
    %v778 = vunpack.c.l.b16 %v505
    %v779 = vunpack.c.l.b16 %v506
    %v780 = vunpack.c.l.b16 %v507
    %v781 = vunpack.c.l.b16 %v508
    %v782 = vunpack.c.l.b16 %v509
    %v783 = vunpack.c.l.b16 %v510
    %v784 = vunpack.c.l.b16 %v511
    %v785 = vunpack.c.l.b16 %v512
    %v786 = vunpack.c.l.b16 %v513
    %v787 = vunpack.c.l.b16 %v514
    %v788 = vunpack.c.l.b16 %v515
    %v789 = vunpack.c.l.b16 %v516
    %v790 = vpack.c.b16 %v775, %v774
    %v791 = vpack.c.b16 %v777, %v776
    %v792 = vpack.c.b16 %v779, %v778
    %v793 = vpack.c.b16 %v781, %v780
    %v794 = vpack.c.b16 %v783, %v782
    %v795 = vpack.c.b16 %v785, %v784
    %v796 = vpack.c.b16 %v787, %v786
    %v797 = vpack.c.b16 %v789, %v788
    %v822 = vunpack.c.l.b16 %v517
    %v823 = vunpack.c.l.b16 %v518
    %v824 = vunpack.c.l.b16 %v519
    %v825 = vunpack.c.l.b16 %v520
    %v826 = vunpack.c.l.b16 %v521
    %v827 = vunpack.c.l.b16 %v522
    %v828 = vunpack.c.l.b16 %v523
    %v829 = vunpack.c.l.b16 %v524
    %v830 = vunpack.c.l.b16 %v525
    %v831 = vunpack.c.l.b16 %v526
    %v832 = vunpack.c.l.b16 %v527
    %v833 = vunpack.c.l.b16 %v528
    %v834 = vunpack.c.l.b16 %v529
    %v835 = vunpack.c.l.b16 %v530
    %v836 = vunpack.c.l.b16 %v531
    %v837 = vunpack.c.l.b16 %v532
    %v838 = vpack.c.b16 %v823, %v822
    %v839 = vpack.c.b16 %v825, %v824
    %v840 = vpack.c.b16 %v827, %v826
    %v841 = vpack.c.b16 %v829, %v828
    %v842 = vpack.c.b16 %v831, %v830
    %v843 = vpack.c.b16 %v833, %v832
    %v844 = vpack.c.b16 %v835, %v834
    %v845 = vpack.c.b16 %v837, %v836
    %854 = vmatprep.subr.bf16.mxu0 0
    %855 = vmatpush1.bf16.msra.mxu0 %v838
    %856 = vmatprep.subr.bf16.mxu0 0
    %857 = vmatpush1.bf16.msra.mxu0 %v839
    %858 = vmatprep.subr.bf16.mxu0 0
    %859 = vmatpush1.bf16.msra.mxu0 %v840
    %860 = vmatprep.subr.bf16.mxu0 0
    %861 = vmatpush1.bf16.msra.mxu0 %v841
    %862 = vmatprep.subr.bf16.mxu0 0
    %863 = vmatpush1.bf16.msra.mxu0 %v842
    %864 = vmatprep.subr.bf16.mxu0 0
    %865 = vmatpush1.bf16.msra.mxu0 %v843
    %866 = vmatprep.subr.bf16.mxu0 0
    %867 = vmatpush1.bf16.msra.mxu0 %v844
    %868 = vmatprep.subr.bf16.mxu0 0
    %869 = vmatpush1.bf16.msra.mxu0 %v845
    %870 = vmatprep.subr.bf16.mxu0 0
    %871 = vmatpush1.bf16.msra.mxu0 0
    %872 = vmatprep.subr.bf16.mxu0 0
    %873 = vmatpush1.bf16.msra.mxu0 0
    %874 = vmatprep.subr.bf16.mxu0 0
    %875 = vmatpush1.bf16.msra.mxu0 0
    %876 = vmatprep.subr.bf16.mxu0 0
    %877 = vmatpush1.bf16.msra.mxu0 0
    %878 = vmatprep.subr.bf16.mxu0 0
    %879 = vmatpush1.bf16.msra.mxu0 0
    %880 = vmatprep.subr.bf16.mxu0 0
    %881 = vmatpush1.bf16.msra.mxu0 0
    %882 = vmatprep.subr.bf16.mxu0 0
    %883 = vmatpush1.bf16.msra.mxu0 0
    %884 = vmatprep.subr.bf16.mxu0 0
    %885 = vmatpush1.bf16.msra.mxu0 0
    %886 = vmatprep.mubr.bf16.mxu0 0
    %887 = vmatmul.mubr.bf16.gmra.mrb[0].mxu0 %v790
    %v888 = vpop.f32.mrb[0].mxu0
    %v889 = vadd.f32 %v696, %v888
    %v890 = vpop.f32.mrb[0].mxu0
    %v891 = vpop.f32.mrb[0].mxu0
    %v892 = vadd.f32 %v699, %v891
    %v893 = vpop.f32.mrb[0].mxu0
    %894 = vmatprep.mubr.bf16.mxu0 0
    %895 = vmatmul.mubr.bf16.gmra.mrb[0].mxu0 %v791
    %v896 = vpop.f32.mrb[0].mxu0
    %v897 = vadd.f32 %v704, %v896
    %v898 = vpop.f32.mrb[0].mxu0
    %v899 = vpop.f32.mrb[0].mxu0
    %v900 = vadd.f32 %v707, %v899
    %v901 = vpop.f32.mrb[0].mxu0
    %902 = vmatprep.mubr.bf16.mxu0 0
    %903 = vmatmul.mubr.bf16.gmra.mrb[0].mxu0 %v792
    %v904 = vpop.f32.mrb[0].mxu0
    %v905 = vadd.f32 %v712, %v904
    %v906 = vpop.f32.mrb[0].mxu0
    %v907 = vpop.f32.mrb[0].mxu0
    %v908 = vadd.f32 %v715, %v907
    %v909 = vpop.f32.mrb[0].mxu0
    %910 = vmatprep.mubr.bf16.mxu0 0
    %911 = vmatmul.mubr.bf16.gmra.mrb[0].mxu0 %v793
    %v912 = vpop.f32.mrb[0].mxu0
    %v913 = vadd.f32 %v720, %v912
    %v914 = vpop.f32.mrb[0].mxu0
    %v915 = vpop.f32.mrb[0].mxu0
    %v916 = vadd.f32 %v723, %v915
    %v917 = vpop.f32.mrb[0].mxu0
    %918 = vmatprep.mubr.bf16.mxu0 0
    %919 = vmatmul.mubr.bf16.gmra.mrb[0].mxu0 %v794
    %v920 = vpop.f32.mrb[0].mxu0
    %v921 = vadd.f32 %v728, %v920
    %v922 = vpop.f32.mrb[0].mxu0
    %v923 = vpop.f32.mrb[0].mxu0
    %v924 = vadd.f32 %v731, %v923
    %v925 = vpop.f32.mrb[0].mxu0
    %926 = vmatprep.mubr.bf16.mxu0 0
    %927 = vmatmul.mubr.bf16.gmra.mrb[0].mxu0 %v795
    %v928 = vpop.f32.mrb[0].mxu0
    %v929 = vadd.f32 %v736, %v928
    %v930 = vpop.f32.mrb[0].mxu0
    %v931 = vpop.f32.mrb[0].mxu0
    %v932 = vadd.f32 %v739, %v931
    %v933 = vpop.f32.mrb[0].mxu0
    %934 = vmatprep.mubr.bf16.mxu0 0
    %935 = vmatmul.mubr.bf16.gmra.mrb[0].mxu0 %v796
    %v936 = vpop.f32.mrb[0].mxu0
    %v937 = vadd.f32 %v744, %v936
    %v938 = vpop.f32.mrb[0].mxu0
    %v939 = vpop.f32.mrb[0].mxu0
    %v940 = vadd.f32 %v747, %v939
    %v941 = vpop.f32.mrb[0].mxu0
    %942 = vmatprep.mubr.bf16.mxu0 0
    %943 = vmatmul.mubr.bf16.gmra.mrb[0].mxu0 %v797
    %v944 = vpop.f32.mrb[0].mxu0
    %v945 = vadd.f32 %v752, %v944
    %v946 = vpop.f32.mrb[0].mxu0
    %v947 = vpop.f32.mrb[0].mxu0
    %v948 = vadd.f32 %v755, %v947
    %v949 = vpop.f32.mrb[0].mxu0
    %950 = vdwg.mxu0
    %v951 = vld [vmem:[%s6 + $0x80] sm:$0xf]
    %v952 = vld [vmem:[%s6 + $0x84] sm:$0xf]
    %v953 = vld [vmem:[%s6 + $0x88] sm:$0xf]
    %v954 = vld [vmem:[%s6 + $0x8c] sm:$0xf]
    %v955 = vld [vmem:[%s6 + $0x90] sm:$0xf]
    %v956 = vld [vmem:[%s6 + $0x94] sm:$0xf]
    %v957 = vld [vmem:[%s6 + $0x98] sm:$0xf]
    %v958 = vld [vmem:[%s6 + $0x9c] sm:$0xf]
    %v959 = vld [vmem:[%s6 + $0xa0] sm:$0xf]
    %v960 = vld [vmem:[%s6 + $0xa4] sm:$0xf]
    %v961 = vld [vmem:[%s6 + $0xa8] sm:$0xf]
    %v962 = vld [vmem:[%s6 + $0xac] sm:$0xf]
    %v963 = vld [vmem:[%s6 + $0xb0] sm:$0xf]
    %v964 = vld [vmem:[%s6 + $0xb4] sm:$0xf]
    %v965 = vld [vmem:[%s6 + $0xb8] sm:$0xf]
    %v966 = vld [vmem:[%s6 + $0xbc] sm:$0xf]
    %v983 = vunpack.c.l.b16 %v951
    %v984 = vunpack.c.l.b16 %v952
    %v985 = vunpack.c.l.b16 %v953
    %v986 = vunpack.c.l.b16 %v954
    %v987 = vunpack.c.l.b16 %v955
    %v988 = vunpack.c.l.b16 %v956
    %v989 = vunpack.c.l.b16 %v957
    %v990 = vunpack.c.l.b16 %v958
    %v991 = vunpack.c.l.b16 %v959
    %v992 = vunpack.c.l.b16 %v960
    %v993 = vunpack.c.l.b16 %v961
    %v994 = vunpack.c.l.b16 %v962
    %v995 = vunpack.c.l.b16 %v963
    %v996 = vunpack.c.l.b16 %v964
    %v997 = vunpack.c.l.b16 %v965
    %v998 = vunpack.c.l.b16 %v966
    %v999 = vpack.c.b16 %v984, %v983
    %v1000 = vpack.c.b16 %v986, %v985
    %v1001 = vpack.c.b16 %v988, %v987
    %v1002 = vpack.c.b16 %v990, %v989
    %v1003 = vpack.c.b16 %v992, %v991
    %v1004 = vpack.c.b16 %v994, %v993
    %v1005 = vpack.c.b16 %v996, %v995
    %v1006 = vpack.c.b16 %v998, %v997
    %1015 = vmatprep.subr.bf16.mxu0 0
    %1016 = vmatpush1.bf16.msra.mxu0 %v999
    %1017 = vmatprep.subr.bf16.mxu0 0
    %1018 = vmatpush1.bf16.msra.mxu0 %v1000
    %1019 = vmatprep.subr.bf16.mxu0 0
    %1020 = vmatpush1.bf16.msra.mxu0 %v1001
    %1021 = vmatprep.subr.bf16.mxu0 0
    %1022 = vmatpush1.bf16.msra.mxu0 %v1002
    %1023 = vmatprep.subr.bf16.mxu0 0
    %1024 = vmatpush1.bf16.msra.mxu0 %v1003
    %1025 = vmatprep.subr.bf16.mxu0 0
    %1026 = vmatpush1.bf16.msra.mxu0 %v1004
    %1027 = vmatprep.subr.bf16.mxu0 0
    %1028 = vmatpush1.bf16.msra.mxu0 %v1005
    %1029 = vmatprep.subr.bf16.mxu0 0
    %1030 = vmatpush1.bf16.msra.mxu0 %v1006
    %1031 = vmatprep.subr.bf16.mxu0 0
    %1032 = vmatpush1.bf16.msra.mxu0 0
    %1033 = vmatprep.subr.bf16.mxu0 0
    %1034 = vmatpush1.bf16.msra.mxu0 0
    %1035 = vmatprep.subr.bf16.mxu0 0
    %1036 = vmatpush1.bf16.msra.mxu0 0
    %1037 = vmatprep.subr.bf16.mxu0 0
    %1038 = vmatpush1.bf16.msra.mxu0 0
    %1039 = vmatprep.subr.bf16.mxu0 0
    %1040 = vmatpush1.bf16.msra.mxu0 0
    %1041 = vmatprep.subr.bf16.mxu0 0
    %1042 = vmatpush1.bf16.msra.mxu0 0
    %1043 = vmatprep.subr.bf16.mxu0 0
    %1044 = vmatpush1.bf16.msra.mxu0 0
    %1045 = vmatprep.subr.bf16.mxu0 0
    %1046 = vmatpush1.bf16.msra.mxu0 0
    %1047 = vmatprep.mubr.bf16.mxu0 0
    %1048 = vmatmul.mubr.bf16.gmra.mrb[0].mxu0 %v493
    %v1049 = vpop.f32.mrb[0].mxu0
    %v1050 = vadd.f32 0.0, %v1049
    %v1051 = vpop.f32.mrb[0].mxu0
    %v1052 = vpop.f32.mrb[0].mxu0
    %v1053 = vadd.f32 0.0, %v1052
    %v1054 = vpop.f32.mrb[0].mxu0
    %1055 = vmatprep.mubr.bf16.mxu0 0
    %1056 = vmatmul.mubr.bf16.gmra.mrb[0].mxu0 %v494
    %v1057 = vpop.f32.mrb[0].mxu0
    %v1058 = vadd.f32 0.0, %v1057
    %v1059 = vpop.f32.mrb[0].mxu0
    %v1060 = vpop.f32.mrb[0].mxu0
    %v1061 = vadd.f32 0.0, %v1060
    %v1062 = vpop.f32.mrb[0].mxu0
    %1063 = vmatprep.mubr.bf16.mxu0 0
    %1064 = vmatmul.mubr.bf16.gmra.mrb[0].mxu0 %v495
    %v1065 = vpop.f32.mrb[0].mxu0
    %v1066 = vadd.f32 0.0, %v1065
    %v1067 = vpop.f32.mrb[0].mxu0
    %v1068 = vpop.f32.mrb[0].mxu0
    %v1069 = vadd.f32 0.0, %v1068
    %v1070 = vpop.f32.mrb[0].mxu0
    %1071 = vmatprep.mubr.bf16.mxu0 0
    %1072 = vmatmul.mubr.bf16.gmra.mrb[0].mxu0 %v496
    %v1073 = vpop.f32.mrb[0].mxu0
    %v1074 = vadd.f32 0.0, %v1073
    %v1075 = vpop.f32.mrb[0].mxu0
    %v1076 = vpop.f32.mrb[0].mxu0
    %v1077 = vadd.f32 0.0, %v1076
    %v1078 = vpop.f32.mrb[0].mxu0
    %1079 = vmatprep.mubr.bf16.mxu0 0
    %1080 = vmatmul.mubr.bf16.gmra.mrb[0].mxu0 %v497
    %v1081 = vpop.f32.mrb[0].mxu0
    %v1082 = vadd.f32 0.0, %v1081
    %v1083 = vpop.f32.mrb[0].mxu0
    %v1084 = vpop.f32.mrb[0].mxu0
    %v1085 = vadd.f32 0.0, %v1084
    %v1086 = vpop.f32.mrb[0].mxu0
    %1087 = vmatprep.mubr.bf16.mxu0 0
    %1088 = vmatmul.mubr.bf16.gmra.mrb[0].mxu0 %v498
    %v1089 = vpop.f32.mrb[0].mxu0
    %v1090 = vadd.f32 0.0, %v1089
    %v1091 = vpop.f32.mrb[0].mxu0
    %v1092 = vpop.f32.mrb[0].mxu0
    %v1093 = vadd.f32 0.0, %v1092
    %v1094 = vpop.f32.mrb[0].mxu0
    %1095 = vmatprep.mubr.bf16.mxu0 0
    %1096 = vmatmul.mubr.bf16.gmra.mrb[0].mxu0 %v499
    %v1097 = vpop.f32.mrb[0].mxu0
    %v1098 = vadd.f32 0.0, %v1097
    %v1099 = vpop.f32.mrb[0].mxu0
    %v1100 = vpop.f32.mrb[0].mxu0
    %v1101 = vadd.f32 0.0, %v1100
    %v1102 = vpop.f32.mrb[0].mxu0
    %1103 = vmatprep.mubr.bf16.mxu0 0
    %1104 = vmatmul.mubr.bf16.gmra.mrb[0].mxu0 %v500
    %v1105 = vpop.f32.mrb[0].mxu0
    %v1106 = vadd.f32 0.0, %v1105
    %v1107 = vpop.f32.mrb[0].mxu0
    %v1108 = vpop.f32.mrb[0].mxu0
    %v1109 = vadd.f32 0.0, %v1108
    %v1110 = vpop.f32.mrb[0].mxu0
    %1111 = vdwg.mxu0
    %v1112 = vadd.f32 %v889, %v1050
    %v1113 = vadd.f32 %v892, %v1053
    %v1114 = vadd.f32 %v897, %v1058
    %v1115 = vadd.f32 %v900, %v1061
    %v1116 = vadd.f32 %v905, %v1066
    %v1117 = vadd.f32 %v908, %v1069
    %v1118 = vadd.f32 %v913, %v1074
    %v1119 = vadd.f32 %v916, %v1077
    %v1120 = vadd.f32 %v921, %v1082
    %v1121 = vadd.f32 %v924, %v1085
    %v1122 = vadd.f32 %v929, %v1090
    %v1123 = vadd.f32 %v932, %v1093
    %v1124 = vadd.f32 %v937, %v1098
    %v1125 = vadd.f32 %v940, %v1101
    %v1126 = vadd.f32 %v945, %v1106
    %v1127 = vadd.f32 %v948, %v1109
    %v1128 = vld [vmem:[%s7] sm:$0x1]
    %v1130 = vlaneseq
    %v1131 = vshrl.u32 %v1130, 7
    %v1132 = vsub.s32 0, %v1131
    %v1133 = vrot.slane %v1128, %v1132
    %v1135 = vadd.f32 %v1112, %v1133
    %v1136 = vadd.f32 %v1113, %v1133
    %v1137 = vadd.f32 %v1114, %v1133
    %v1138 = vadd.f32 %v1115, %v1133
    %v1139 = vadd.f32 %v1116, %v1133
    %v1140 = vadd.f32 %v1117, %v1133
    %v1141 = vadd.f32 %v1118, %v1133
    %v1142 = vadd.f32 %v1119, %v1133
    %v1143 = vadd.f32 %v1120, %v1133
    %v1144 = vadd.f32 %v1121, %v1133
    %v1145 = vadd.f32 %v1122, %v1133
    %v1146 = vadd.f32 %v1123, %v1133
    %v1147 = vadd.f32 %v1124, %v1133
    %v1148 = vadd.f32 %v1125, %v1133
    %v1149 = vadd.f32 %v1126, %v1133
    %v1150 = vadd.f32 %v1127, %v1133
    %v1151 = vlaneseq
    %v1152 = vand.u32 %v1151, 127
    %vm1153 = vcmp.lt.s32.totalorder %v1152, 4
    %v1154 = vsel %vm1153, %v1135, -1e+30
    %v1155 = vsel %vm1153, %v1136, -1e+30
    %v1156 = vsel %vm1153, %v1137, -1e+30
    %v1157 = vsel %vm1153, %v1138, -1e+30
    %v1158 = vsel %vm1153, %v1139, -1e+30
    %v1159 = vsel %vm1153, %v1140, -1e+30
    %v1160 = vsel %vm1153, %v1141, -1e+30
    %v1161 = vsel %vm1153, %v1142, -1e+30
    %v1162 = vsel %vm1153, %v1143, -1e+30
    %v1163 = vsel %vm1153, %v1144, -1e+30
    %v1164 = vsel %vm1153, %v1145, -1e+30
    %v1165 = vsel %vm1153, %v1146, -1e+30
    %v1166 = vsel %vm1153, %v1147, -1e+30
    %v1167 = vsel %vm1153, %v1148, -1e+30
    %v1168 = vsel %vm1153, %v1149, -1e+30
    %v1169 = vsel %vm1153, %v1150, -1e+30
    %1170 = vmax.xlane.f32.xlu0 %v1154
    %v1171 = vpop.xlane.xlu0 %1170
    %1172 = vmax.xlane.f32.xlu0 %v1155
    %v1173 = vpop.xlane.xlu0 %1172
    %1174 = vmax.xlane.f32.xlu0 %v1156
    %v1175 = vpop.xlane.xlu0 %1174
    %1176 = vmax.xlane.f32.xlu0 %v1157
    %v1177 = vpop.xlane.xlu0 %1176
    %1178 = vmax.xlane.f32.xlu0 %v1158
    %v1179 = vpop.xlane.xlu0 %1178
    %1180 = vmax.xlane.f32.xlu0 %v1159
    %v1181 = vpop.xlane.xlu0 %1180
    %1182 = vmax.xlane.f32.xlu0 %v1160
    %v1183 = vpop.xlane.xlu0 %1182
    %1184 = vmax.xlane.f32.xlu0 %v1161
    %v1185 = vpop.xlane.xlu0 %1184
    %1186 = vmax.xlane.f32.xlu0 %v1162
    %v1187 = vpop.xlane.xlu0 %1186
    %1188 = vmax.xlane.f32.xlu0 %v1163
    %v1189 = vpop.xlane.xlu0 %1188
    %1190 = vmax.xlane.f32.xlu0 %v1164
    %v1191 = vpop.xlane.xlu0 %1190
    %1192 = vmax.xlane.f32.xlu0 %v1165
    %v1193 = vpop.xlane.xlu0 %1192
    %1194 = vmax.xlane.f32.xlu0 %v1166
    %v1195 = vpop.xlane.xlu0 %1194
    %1196 = vmax.xlane.f32.xlu0 %v1167
    %v1197 = vpop.xlane.xlu0 %1196
    %1198 = vmax.xlane.f32.xlu0 %v1168
    %v1199 = vpop.xlane.xlu0 %1198
    %1200 = vmax.xlane.f32.xlu0 %v1169
    %v1201 = vpop.xlane.xlu0 %1200
    %v1202 = vsub.f32 %v1154, %v1171
    %v1203 = vsub.f32 %v1155, %v1173
    %v1204 = vsub.f32 %v1156, %v1175
    %v1205 = vsub.f32 %v1157, %v1177
    %v1206 = vsub.f32 %v1158, %v1179
    %v1207 = vsub.f32 %v1159, %v1181
    %v1208 = vsub.f32 %v1160, %v1183
    %v1209 = vsub.f32 %v1161, %v1185
    %v1210 = vsub.f32 %v1162, %v1187
    %v1211 = vsub.f32 %v1163, %v1189
    %v1212 = vsub.f32 %v1164, %v1191
    %v1213 = vsub.f32 %v1165, %v1193
    %v1214 = vsub.f32 %v1166, %v1195
    %v1215 = vsub.f32 %v1167, %v1197
    %v1216 = vsub.f32 %v1168, %v1199
    %v1217 = vsub.f32 %v1169, %v1201
    %v1218 = vmul.f32 %v1202, 1.442695
    %v1219 = vpow.pop %v1218
    %v1220 = vmul.f32 %v1203, 1.442695
    %v1221 = vpow.pop %v1220
    %v1222 = vmul.f32 %v1204, 1.442695
    %v1223 = vpow.pop %v1222
    %v1224 = vmul.f32 %v1205, 1.442695
    %v1225 = vpow.pop %v1224
    %v1226 = vmul.f32 %v1206, 1.442695
    %v1227 = vpow.pop %v1226
    %v1228 = vmul.f32 %v1207, 1.442695
    %v1229 = vpow.pop %v1228
    %v1230 = vmul.f32 %v1208, 1.442695
    %v1231 = vpow.pop %v1230
    %v1232 = vmul.f32 %v1209, 1.442695
    %v1233 = vpow.pop %v1232
    %v1234 = vmul.f32 %v1210, 1.442695
    %v1235 = vpow.pop %v1234
    %v1236 = vmul.f32 %v1211, 1.442695
    %v1237 = vpow.pop %v1236
    %v1238 = vmul.f32 %v1212, 1.442695
    %v1239 = vpow.pop %v1238
    %v1240 = vmul.f32 %v1213, 1.442695
    %v1241 = vpow.pop %v1240
    %v1242 = vmul.f32 %v1214, 1.442695
    %v1243 = vpow.pop %v1242
    %v1244 = vmul.f32 %v1215, 1.442695
    %v1245 = vpow.pop %v1244
    %v1246 = vmul.f32 %v1216, 1.442695
    %v1247 = vpow.pop %v1246
    %v1248 = vmul.f32 %v1217, 1.442695
    %v1249 = vpow.pop %v1248
    %1250 = vadd.xlane.f32.xlu0 %v1219
    %v1251 = vpop.xlane.xlu0 %1250
    %1252 = vadd.xlane.f32.xlu0 %v1221
    %v1253 = vpop.xlane.xlu0 %1252
    %1254 = vadd.xlane.f32.xlu0 %v1223
    %v1255 = vpop.xlane.xlu0 %1254
    %1256 = vadd.xlane.f32.xlu0 %v1225
    %v1257 = vpop.xlane.xlu0 %1256
    %1258 = vadd.xlane.f32.xlu0 %v1227
    %v1259 = vpop.xlane.xlu0 %1258
    %1260 = vadd.xlane.f32.xlu0 %v1229
    %v1261 = vpop.xlane.xlu0 %1260
    %1262 = vadd.xlane.f32.xlu0 %v1231
    %v1263 = vpop.xlane.xlu0 %1262
    %1264 = vadd.xlane.f32.xlu0 %v1233
    %v1265 = vpop.xlane.xlu0 %1264
    %1266 = vadd.xlane.f32.xlu0 %v1235
    %v1267 = vpop.xlane.xlu0 %1266
    %1268 = vadd.xlane.f32.xlu0 %v1237
    %v1269 = vpop.xlane.xlu0 %1268
    %1270 = vadd.xlane.f32.xlu0 %v1239
    %v1271 = vpop.xlane.xlu0 %1270
    %1272 = vadd.xlane.f32.xlu0 %v1241
    %v1273 = vpop.xlane.xlu0 %1272
    %1274 = vadd.xlane.f32.xlu0 %v1243
    %v1275 = vpop.xlane.xlu0 %1274
    %1276 = vadd.xlane.f32.xlu0 %v1245
    %v1277 = vpop.xlane.xlu0 %1276
    %1278 = vadd.xlane.f32.xlu0 %v1247
    %v1279 = vpop.xlane.xlu0 %1278
    %1280 = vadd.xlane.f32.xlu0 %v1249
    %v1281 = vpop.xlane.xlu0 %1280
    %v1282 = vlog2.pop %v1251
    %v1283 = vmul.f32 %v1282, 0.6931472
    %v1284 = vlog2.pop %v1253
    %v1285 = vmul.f32 %v1284, 0.6931472
    %v1286 = vlog2.pop %v1255
    %v1287 = vmul.f32 %v1286, 0.6931472
    %v1288 = vlog2.pop %v1257
    %v1289 = vmul.f32 %v1288, 0.6931472
    %v1290 = vlog2.pop %v1259
    %v1291 = vmul.f32 %v1290, 0.6931472
    %v1292 = vlog2.pop %v1261
    %v1293 = vmul.f32 %v1292, 0.6931472
    %v1294 = vlog2.pop %v1263
    %v1295 = vmul.f32 %v1294, 0.6931472
    %v1296 = vlog2.pop %v1265
    %v1297 = vmul.f32 %v1296, 0.6931472
    %v1298 = vlog2.pop %v1267
    %v1299 = vmul.f32 %v1298, 0.6931472
    %v1300 = vlog2.pop %v1269
    %v1301 = vmul.f32 %v1300, 0.6931472
    %v1302 = vlog2.pop %v1271
    %v1303 = vmul.f32 %v1302, 0.6931472
    %v1304 = vlog2.pop %v1273
    %v1305 = vmul.f32 %v1304, 0.6931472
    %v1306 = vlog2.pop %v1275
    %v1307 = vmul.f32 %v1306, 0.6931472
    %v1308 = vlog2.pop %v1277
    %v1309 = vmul.f32 %v1308, 0.6931472
    %v1310 = vlog2.pop %v1279
    %v1311 = vmul.f32 %v1310, 0.6931472
    %v1312 = vlog2.pop %v1281
    %v1313 = vmul.f32 %v1312, 0.6931472
    %v1314 = vsub.f32 %v1202, %v1283
    %v1315 = vsub.f32 %v1203, %v1285
    %v1316 = vsub.f32 %v1204, %v1287
    %v1317 = vsub.f32 %v1205, %v1289
    %v1318 = vsub.f32 %v1206, %v1291
    %v1319 = vsub.f32 %v1207, %v1293
    %v1320 = vsub.f32 %v1208, %v1295
    %v1321 = vsub.f32 %v1209, %v1297
    %v1322 = vsub.f32 %v1210, %v1299
    %v1323 = vsub.f32 %v1211, %v1301
    %v1324 = vsub.f32 %v1212, %v1303
    %v1325 = vsub.f32 %v1213, %v1305
    %v1326 = vsub.f32 %v1214, %v1307
    %v1327 = vsub.f32 %v1215, %v1309
    %v1328 = vsub.f32 %v1216, %v1311
    %v1329 = vsub.f32 %v1217, %v1313
    %1330 = vst [vmem:[%s8] sm:$0xff] %v1314
    %1331 = vst [vmem:[%s8 + $0x8] sm:$0xff] %v1315
    %1332 = vst [vmem:[%s8 + $0x10] sm:$0xff] %v1316
    %1333 = vst [vmem:[%s8 + $0x18] sm:$0xff] %v1317
    %1334 = vst [vmem:[%s8 + $0x20] sm:$0xff] %v1318
    %1335 = vst [vmem:[%s8 + $0x28] sm:$0xff] %v1319
    %1336 = vst [vmem:[%s8 + $0x30] sm:$0xff] %v1320
    %1337 = vst [vmem:[%s8 + $0x38] sm:$0xff] %v1321
    %1338 = vst [vmem:[%s8 + $0x40] sm:$0xff] %v1322
    %1339 = vst [vmem:[%s8 + $0x48] sm:$0xff] %v1323
    %1340 = vst [vmem:[%s8 + $0x50] sm:$0xff] %v1324
    %1341 = vst [vmem:[%s8 + $0x58] sm:$0xff] %v1325
    %1342 = vst [vmem:[%s8 + $0x60] sm:$0xff] %v1326
    %1343 = vst [vmem:[%s8 + $0x68] sm:$0xff] %v1327
    %1344 = vst [vmem:[%s8 + $0x70] sm:$0xff] %v1328
    %1345 = vst [vmem:[%s8 + $0x78] sm:$0xff] %v1329
  $region41: #{gcn3_forward.7} parent=0 // pred_fallthru
    _
  // Predicated region
  $region42: #{gcn3_forward.7} parent=0 // pred_check
    _
  $region43: #{gcn3_forward.7} parent=0 // pred_check_branch
    %1347 = sbr.rel (0) target = $region45
  $region44: #{gcn3_forward.7} parent=0 // pred_region
    _
  $region45: #{gcn3_forward.7} parent=0 // pred_fallthru
    _
  // Predicated region
  $region46: #{gcn3_forward.7} parent=0 // pred_check
    _
  $region47: #{gcn3_forward.7} parent=0 // pred_check_branch
    %1349 = sbr.rel (0) target = $region49
  $region48: #{gcn3_forward.7} parent=0 // pred_region
    _
  $region49: #{gcn3_forward.7} parent=0 // pred_fallthru
    _

</llo_original>
